<compile_context>
chip_gen: v7x
topology: tpu7x:2x2x1
jax: 0.10.0
libtpu: 0.0.40
codegen_flags: <defaults>
</compile_context>

<pallas_src>
import functools
import math

import numpy as np
import jax
import jax.numpy as jnp
from jax.experimental import pallas as pl
from jax.experimental.pallas import tpu as pltpu

BN_EPS = 1e-5


def _round_up(x, m):
    return ((x + m - 1) // m) * m


# --------------------------------------------------------------------------
# Kernel
# --------------------------------------------------------------------------
def _global_block_kernel(x_ref, w1_ref, w2_ref, vec_ref, rw_ref, rb_ref,
                         bank_ref, f_ref, gr_ref, gi_ref, o_ref, *, t_true):
    BB, C, Tp = x_ref.shape
    K = rw_ref.shape[0]
    NFp = gr_ref.shape[0]

    # packed per-channel vectors:
    # [b1, s1, t1, b2_folded, s3, t3, pad_const, 0]
    b1 = vec_ref[:, 0:1]
    s1 = vec_ref[:, 1:2]
    t1 = vec_ref[:, 2:3]
    b2f = vec_ref[:, 3:4]
    s3 = vec_ref[:, 4:5]
    t3 = vec_ref[:, 5:6]
    pad_c = vec_ref[:, 6:7]               # relu(b1)*s1 + t1 : h in padded cols

    w1 = w1_ref[...]                      # (C, C)  bf16
    w2 = w2_ref[...]                      # (C, C)  bf16 (BN2 folded in)
    fmat = f_ref[...]                     # (Tp, 2*NFp) bf16  [Fr | Fi]
    gr_m = gr_ref[...]                    # (NFp, Tp)   bf16
    gi_m = gi_ref[...]                    # (NFp, Tp)   bf16
    rw = rw_ref[...]                      # (K, C)  f32
    rb = rb_ref[...]                      # (K, 1)  f32

    inv_t = 1.0 / t_true
    pad_cols = float(Tp - t_true)

    def body(b, carry):
        xb = x_ref[b]                                           # (C, Tp) f32

        # proj1 (1x1 conv) -> ReLU -> BN1 (inference affine).  Padded time
        # columns of h equal pad_c (x pad cols are zero); the forward DFT
        # rows >= T are zero, so they never leak into the spectrum, and the
        # pooling below is corrected analytically (no mask pass).
        h = jnp.dot(w1, xb.astype(jnp.bfloat16),
                    preferred_element_type=jnp.float32) + b1
        h = jnp.maximum(h, 0.0) * s1 + t1

        # ---------------- SparseDGF (dynamic global filter) ----------------
        # routing: GAP over true time -> linear -> softmax over K banks.
        pooled = (jnp.sum(h, axis=1, keepdims=True)
                  - pad_cols * pad_c) * inv_t                         # (C, 1)
        logits = jnp.dot(rw, pooled, preferred_element_type=jnp.float32) + rb
        logits = logits - jnp.max(logits, axis=0, keepdims=True)
        e = jnp.exp(logits)
        r = e / jnp.sum(e, axis=0, keepdims=True)                     # (K, 1)

        # mix K complex banks into one per-sample filter [wr | wi] (C, 2*NFp)
        # (banks stay resident in bf16; mixing accumulates in f32)
        mixed = bank_ref[0].astype(jnp.float32) * r[0:1, 0:1]
        for k in range(1, K):
            mixed = mixed + bank_ref[k].astype(jnp.float32) * r[k:k + 1, 0:1]
        wr = mixed[:, :NFp]
        wi = mixed[:, NFp:]

        # rfft (norm='ortho') as ONE lane-dense bf16 matmul: [xr | xi]
        xcat = jnp.dot(h.astype(jnp.bfloat16), fmat,
                       preferred_element_type=jnp.float32)            # (C, 2*NFp)
        xr = xcat[:, :NFp]
        xi = xcat[:, NFp:]

        # complex multiply by the dynamic filter
        yr = xr * wr - xi * wi
        yi = xr * wi + xi * wr

        # irfft (norm='ortho', n=T): two accumulating matmuls (no concatenate)
        g = jnp.dot(yr.astype(jnp.bfloat16), gr_m,
                    preferred_element_type=jnp.float32)
        g = g + jnp.dot(yi.astype(jnp.bfloat16), gi_m,
                        preferred_element_type=jnp.float32)           # (C, Tp)
        # dropout inside SparseDGF: identity at inference.

        # ReLU -> (BN2 folded into proj2) -> proj2 -> ReLU -> BN3 -> residual
        g = jnp.maximum(g, 0.0)
        h3 = jnp.dot(w2, g.astype(jnp.bfloat16),
                     preferred_element_type=jnp.float32) + b2f
        h3 = jnp.maximum(h3, 0.0) * s3 + t3

        # store only the true time columns (unpadded lane-masked store)
        o_ref[b] = (xb + h3)[:, :t_true]
        return carry

    if BB == 1:
        body(0, 0)
    else:
        jax.lax.fori_loop(0, BB, body, 0, unroll=True)


# --------------------------------------------------------------------------
# Host-side wrapper
# --------------------------------------------------------------------------
def global_block(x, kp, samples_per_step=1):
    B, C, T = x.shape
    assert T == kp["T"]
    Tp, NFp = kp["Tp"], kp["NFp"]
    K = kp["rw"].shape[0]

    bb = samples_per_step
    assert B % bb == 0, "samples_per_step must divide the batch"

    xpad = jnp.pad(x, ((0, 0), (0, 0), (0, Tp - T))) if Tp != T else x

    def const(shape):
        return pl.BlockSpec(shape, lambda i: (0,) * len(shape))

    in_specs = [
        pl.BlockSpec((bb, C, Tp), lambda i: (i, 0, 0)),     # x (padded time)
        const((C, C)),                                      # w1 (bf16)
        const((C, C)),                                      # w2 folded (bf16)
        const((C, 8)),                                      # packed per-ch vectors
        const((K, C)), const((K, 1)),                       # routing W, b
        const((K, C, 2 * NFp)),                             # banks [re | im] (bf16)
        const((Tp, 2 * NFp)),                               # forward DFT [Fr | Fi]
        const((NFp, Tp)), const((NFp, Tp)),                 # inverse DFT Gr, Gi
    ]
    consts = (kp["w1"], kp["w2f"], kp["vec"], kp["rw"], kp["rb"],
              kp["bank"], kp["fcat"], kp["gr"], kp["gi"])

    # Size the scoped VMEM to the working set (constants are double-buffered
    # by default), then clamp below physical VMEM with headroom for Mosaic's
    # internal scratch.  v5e/v6e: 128 MiB physical; v7x: 64 MiB per core.
    const_bytes = sum(int(a.size) * a.dtype.itemsize for a in consts)
    io_bytes = 2 * bb * C * (Tp + T) * 4                     # x + out, 2x buffered
    live_bytes = 12 * bb * C * max(Tp, 2 * NFp) * 4          # f32 intermediates
    want = int(1.3 * (2 * const_bytes + io_bytes + live_bytes))
    try:
        phys = int(pltpu.get_tpu_info().vmem_capacity_bytes)
    except Exception:
        phys = 64 << 20
    ceiling = (phys * 3) // 4
    vmem_limit = min(ceiling, max(32 << 20, want))

    # proj1 + proj2 + forward/inverse DFT matmuls per sample.
    matmul_flops = 2 * C * Tp * (2 * C + 4 * NFp)
    cost = pl.CostEstimate(
        flops=int(B * matmul_flops),
        transcendentals=int(B * K),
        bytes_accessed=int(const_bytes + B * C * (Tp + T) * 4),
    )

    kernel = functools.partial(_global_block_kernel, t_true=T)
    out = pl.pallas_call(
        kernel,
        out_shape=jax.ShapeDtypeStruct((B, C, T), jnp.float32),
        grid_spec=pltpu.PrefetchScalarGridSpec(
            num_scalar_prefetch=0,
            grid=(B // bb,),
            in_specs=in_specs,
            out_specs=pl.BlockSpec((bb, C, T), lambda i: (i, 0, 0)),
        ),
        compiler_params=pltpu.CompilerParams(
            dimension_semantics=("parallel",),
            vmem_limit_bytes=vmem_limit,
        ),
        cost_estimate=cost,
    )(xpad, *consts)

    return out


# --------------------------------------------------------------------------
# Parameter construction / preparation
# --------------------------------------------------------------------------
def make_dft_matrices(T):
    """Real/imag DFT matrices reproducing torch.fft.rfft/irfft with norm='ortho'."""
    NF = T // 2 + 1
    t = np.arange(T)[:, None].astype(np.float64)
    f = np.arange(NF)[None, :].astype(np.float64)
    ang = 2.0 * np.pi * t * f / T
    scale = 1.0 / np.sqrt(T)
    Fr = (np.cos(ang) * scale).astype(np.float32)                     # (T, NF)
    Fi = (-np.sin(ang) * scale).astype(np.float32)                    # (T, NF)
    c = np.full((NF, 1), 2.0)
    c[0, 0] = 1.0
    if T % 2 == 0:
        c[-1, 0] = 1.0
    Gr = (c * np.cos(ang.T) * scale).astype(np.float32)               # (NF, T)
    Gi = (-c * np.sin(ang.T) * scale).astype(np.float32)              # (NF, T)
    return Fr, Fi, Gr, Gi


def init_params(key, dim, T, K):
    """f32 'module state dict' (mirrors the PyTorch module, inference mode)."""
    NF = T // 2 + 1
    ks = jax.random.split(key, 11)

    def bn(k):
        k1, k2, k3, k4 = jax.random.split(k, 4)
        gamma = 1.0 + 0.1 * jax.random.normal(k1, (dim, 1))
        beta = 0.1 * jax.random.normal(k2, (dim, 1))
        mean = 0.1 * jax.random.normal(k3, (dim, 1))
        var = 1.0 + 0.1 * jax.random.uniform(k4, (dim, 1))
        scale = gamma / jnp.sqrt(var + BN_EPS)
        shift = beta - mean * scale
        return scale.astype(jnp.float32), shift.astype(jnp.float32)

    s1, t1 = bn(ks[0]); s2, t2 = bn(ks[1]); s3, t3 = bn(ks[2])
    cscale = 1.0 / math.sqrt(dim)
    return {
        "w1": cscale * jax.random.normal(ks[3], (dim, dim), jnp.float32),
        "b1": cscale * jax.random.normal(ks[4], (dim, 1), jnp.float32),
        "w2": cscale * jax.random.normal(ks[5], (dim, dim), jnp.float32),
        "b2": cscale * jax.random.normal(ks[6], (dim, 1), jnp.float32),
        "rw": cscale * jax.random.normal(ks[7], (K, dim), jnp.float32),
        "rb": 0.1 * jax.random.normal(ks[8], (K, 1), jnp.float32),
        "bank_r": 0.02 * jax.random.normal(ks[9], (K, dim, NF), jnp.float32),
        "bank_i": 0.02 * jax.random.normal(ks[10], (K, dim, NF), jnp.float32),
        "s1": s1, "t1": t1, "s2": s2, "t2": t2, "s3": s3, "t3": t3,
    }


def prepare_kernel_params(p, T):
    """Pad / concatenate / fold / cast module params into kernel-ready tensors."""
    C = p["w1"].shape[0]
    K = p["rw"].shape[0]
    NF = T // 2 + 1
    Tp = _round_up(T, 128)
    NFp = _round_up(NF, 128)

    Fr, Fi, Gr, Gi = make_dft_matrices(T)
    fcat = np.zeros((Tp, 2 * NFp), np.float32)            # [Fr | Fi], zero-padded
    fcat[:T, :NF] = Fr
    fcat[:T, NFp:NFp + NF] = Fi
    gr_m = np.zeros((NFp, Tp), np.float32)                 # Gr, zero-padded
    gr_m[:NF, :T] = Gr
    gi_m = np.zeros((NFp, Tp), np.float32)                 # Gi, zero-padded
    gi_m[:NF, :T] = Gi

    bank = np.zeros((K, C, 2 * NFp), np.float32)          # [re | im], zero-padded
    bank[:, :, :NF] = np.asarray(p["bank_r"], np.float32)
    bank[:, :, NFp:NFp + NF] = np.asarray(p["bank_i"], np.float32)

    # Fold BN2 into proj2 (exact: ReLU sits before BN2).
    w2 = np.asarray(p["w2"], np.float32)
    s2 = np.asarray(p["s2"], np.float32)
    t2 = np.asarray(p["t2"], np.float32)
    w2f = w2 * s2[:, 0][None, :]
    b2f = np.asarray(p["b2"], np.float32) + w2 @ t2

    b1 = np.asarray(p["b1"], np.float32)
    s1 = np.asarray(p["s1"], np.float32)
    t1 = np.asarray(p["t1"], np.float32)
    pad_const = np.maximum(b1, 0.0) * s1 + t1             # h value in padded cols

    vec = np.zeros((C, 8), np.float32)                    # packed per-channel vectors
    vec[:, 0:1] = b1
    vec[:, 1:2] = s1
    vec[:, 2:3] = t1
    vec[:, 3:4] = b2f
    vec[:, 4:5] = np.asarray(p["s3"], np.float32)
    vec[:, 5:6] = np.asarray(p["t3"], np.float32)
    vec[:, 6:7] = pad_const

    return {
        "w1": jnp.asarray(p["w1"], jnp.bfloat16),
        "w2f": jnp.asarray(w2f, jnp.bfloat16),
        "vec": jnp.asarray(vec, jnp.float32),
        "rw": jnp.asarray(p["rw"], jnp.float32),
        "rb": jnp.asarray(p["rb"], jnp.float32),
        "bank": jnp.asarray(bank, jnp.bfloat16),
        "fcat": jnp.asarray(fcat, jnp.bfloat16),
        "gr": jnp.asarray(gr_m, jnp.bfloat16),
        "gi": jnp.asarray(gi_m, jnp.bfloat16),
        "T": T, "Tp": Tp, "NFp": NFp,
    }


# --------------------------------------------------------------------------
# Pure-JAX reference (f32, jnp.fft) for numerical validation
# --------------------------------------------------------------------------
def reference(x, p):
    hi = jax.lax.Precision.HIGHEST
    h = jnp.einsum("oc,bct->bot", p["w1"], x, precision=hi) + p["b1"][None]
    h = jax.nn.relu(h) * p["s1"][None] + p["t1"][None]

    pooled = jnp.mean(h, axis=-1)                                     # (B, C)
    logits = jnp.einsum("bc,kc->bk", pooled, p["rw"], precision=hi) + p["rb"][:, 0][None]
    r = jax.nn.softmax(logits, axis=-1)                               # (B, K)

    X = jnp.fft.rfft(h, axis=-1, norm="ortho")
    W = (p["bank_r"] + 1j * p["bank_i"]).astype(jnp.complex64)
    Wd = jnp.einsum("bk,kcf->bcf", r.astype(jnp.complex64), W)
    g = jnp.fft.irfft(X * Wd, n=x.shape[-1], axis=-1, norm="ortho")

    g = jax.nn.relu(g) * p["s2"][None] + p["t2"][None]
    h3 = jnp.einsum("oc,bct->bot", p["w2"], g, precision=hi) + p["b2"][None]
    h3 = jax.nn.relu(h3) * p["s3"][None] + p["t3"][None]
    return x + h3


if __name__ == "__main__":
    B, C, T, K = 4, 16, 32, 4
    key = jax.random.PRNGKey(0)
    kx, kparam = jax.random.split(key)
    x = jax.random.normal(kx, (B, C, T), jnp.float32)

    params = init_params(kparam, C, T, K)
    kparams = prepare_kernel_params(params, T)

    out = jax.block_until_ready(global_block(x, kparams))                     # bb=1
    out2 = jax.block_until_ready(global_block(x, kparams, samples_per_step=2))

    ref = reference(x, params)
    # Tolerance covers bf16 weight storage + bf16 MXU matmuls vs the f32
    # HIGHEST-precision / exact-FFT reference.
    np.testing.assert_allclose(np.asarray(out), np.asarray(ref), rtol=2e-2, atol=2e-2)
    np.testing.assert_allclose(np.asarray(out2), np.asarray(ref), rtol=2e-2, atol=2e-2)
    print("KERNEL_OK")
</pallas_src>

<mosaic_0001>
module attributes {stable_mosaic.version = 11 : i64} {
  func.func @_global_block_kernel(%arg0: i32, %arg1: memref<1x16x128xf32, #tpu.memory_space<vmem>>, %arg2: memref<16x16xbf16, #tpu.memory_space<vmem>>, %arg3: memref<16x16xbf16, #tpu.memory_space<vmem>>, %arg4: memref<16x8xf32, #tpu.memory_space<vmem>>, %arg5: memref<4x16xf32, #tpu.memory_space<vmem>>, %arg6: memref<4x1xf32, #tpu.memory_space<vmem>>, %arg7: memref<4x16x256xbf16, #tpu.memory_space<vmem>>, %arg8: memref<128x256xbf16, #tpu.memory_space<vmem>>, %arg9: memref<128x128xbf16, #tpu.memory_space<vmem>>, %arg10: memref<128x128xbf16, #tpu.memory_space<vmem>>, %arg11: memref<1x16x32xf32, #tpu.memory_space<vmem>>) attributes {dimension_semantics = [#tpu.dimension_semantics<parallel>], iteration_bounds = array<i64: 4>, scalar_prefetch = 0 : i64, scratch_operands = 0 : i64, tpu.core_type = #tpu.core_type<tc>, window_params = [{transform_indices = @transform_0, window_bounds = array<i64: 1, 16, 128>}, {pipeline_mode = #tpu.pipeline_mode<synchronous>, transform_indices = @transform_1, window_bounds = array<i64: 16, 16>}, {pipeline_mode = #tpu.pipeline_mode<synchronous>, transform_indices = @transform_2, window_bounds = array<i64: 16, 16>}, {pipeline_mode = #tpu.pipeline_mode<synchronous>, transform_indices = @transform_3, window_bounds = array<i64: 16, 8>}, {pipeline_mode = #tpu.pipeline_mode<synchronous>, transform_indices = @transform_4, window_bounds = array<i64: 4, 16>}, {pipeline_mode = #tpu.pipeline_mode<synchronous>, transform_indices = @transform_5, window_bounds = array<i64: 4, 1>}, {pipeline_mode = #tpu.pipeline_mode<synchronous>, transform_indices = @transform_6, window_bounds = array<i64: 4, 16, 256>}, {pipeline_mode = #tpu.pipeline_mode<synchronous>, transform_indices = @transform_7, window_bounds = array<i64: 128, 256>}, {pipeline_mode = #tpu.pipeline_mode<synchronous>, transform_indices = @transform_8, window_bounds = array<i64: 128, 128>}, {pipeline_mode = #tpu.pipeline_mode<synchronous>, transform_indices = @transform_9, window_bounds = array<i64: 128, 128>}, {transform_indices = @transform_10, window_bounds = array<i64: 1, 16, 32>}]} {
    %c0 = arith.constant 0 : index
    %c0_0 = arith.constant 0 : index
    %0 = vector.load %arg4[%c0, %c0_0] : memref<16x8xf32, #tpu.memory_space<vmem>>, vector<16x1xf32>
    %c0_1 = arith.constant 0 : index
    %c1 = arith.constant 1 : index
    %1 = vector.load %arg4[%c0_1, %c1] : memref<16x8xf32, #tpu.memory_space<vmem>>, vector<16x1xf32>
    %c0_2 = arith.constant 0 : index
    %c2 = arith.constant 2 : index
    %2 = vector.load %arg4[%c0_2, %c2] : memref<16x8xf32, #tpu.memory_space<vmem>>, vector<16x1xf32>
    %c0_3 = arith.constant 0 : index
    %c3 = arith.constant 3 : index
    %3 = vector.load %arg4[%c0_3, %c3] : memref<16x8xf32, #tpu.memory_space<vmem>>, vector<16x1xf32>
    %c0_4 = arith.constant 0 : index
    %c4 = arith.constant 4 : index
    %4 = vector.load %arg4[%c0_4, %c4] : memref<16x8xf32, #tpu.memory_space<vmem>>, vector<16x1xf32>
    %c0_5 = arith.constant 0 : index
    %c5 = arith.constant 5 : index
    %5 = vector.load %arg4[%c0_5, %c5] : memref<16x8xf32, #tpu.memory_space<vmem>>, vector<16x1xf32>
    %c0_6 = arith.constant 0 : index
    %c6 = arith.constant 6 : index
    %6 = vector.load %arg4[%c0_6, %c6] : memref<16x8xf32, #tpu.memory_space<vmem>>, vector<16x1xf32>
    %c0_7 = arith.constant 0 : index
    %c0_8 = arith.constant 0 : index
    %7 = vector.load %arg2[%c0_7, %c0_8] : memref<16x16xbf16, #tpu.memory_space<vmem>>, vector<16x16xbf16>
    %c0_9 = arith.constant 0 : index
    %c0_10 = arith.constant 0 : index
    %8 = vector.load %arg3[%c0_9, %c0_10] : memref<16x16xbf16, #tpu.memory_space<vmem>>, vector<16x16xbf16>
    %c0_11 = arith.constant 0 : index
    %c0_12 = arith.constant 0 : index
    %9 = vector.load %arg8[%c0_11, %c0_12] : memref<128x256xbf16, #tpu.memory_space<vmem>>, vector<128x256xbf16>
    %c0_13 = arith.constant 0 : index
    %c0_14 = arith.constant 0 : index
    %10 = vector.load %arg9[%c0_13, %c0_14] : memref<128x128xbf16, #tpu.memory_space<vmem>>, vector<128x128xbf16>
    %c0_15 = arith.constant 0 : index
    %c0_16 = arith.constant 0 : index
    %11 = vector.load %arg10[%c0_15, %c0_16] : memref<128x128xbf16, #tpu.memory_space<vmem>>, vector<128x128xbf16>
    %c0_17 = arith.constant 0 : index
    %c0_18 = arith.constant 0 : index
    %12 = vector.load %arg5[%c0_17, %c0_18] : memref<4x16xf32, #tpu.memory_space<vmem>>, vector<4x16xf32>
    %c0_19 = arith.constant 0 : index
    %c0_20 = arith.constant 0 : index
    %13 = vector.load %arg6[%c0_19, %c0_20] : memref<4x1xf32, #tpu.memory_space<vmem>>, vector<4x1xf32>
    %c0_21 = arith.constant 0 : index
    %c0_22 = arith.constant 0 : index
    %c0_23 = arith.constant 0 : index
    %14 = vector.load %arg1[%c0_21, %c0_22, %c0_23] : memref<1x16x128xf32, #tpu.memory_space<vmem>>, vector<1x16x128xf32>
    %15 = vector.shape_cast %14 : vector<1x16x128xf32> to vector<16x128xf32>
    %16 = arith.truncf %15 : vector<16x128xf32> to vector<16x128xbf16>
    %cst = arith.constant dense<0.000000e+00> : vector<16x128xf32>
    %17 = tpu.matmul %7, %16, %cst {dimension_numbers = #tpu.dot_dimension_numbers<[1], [0], [0], [1], [0, 0, 1, 1], [], []>} : vector<16x16xbf16>, vector<16x128xbf16>, vector<16x128xf32> -> vector<16x128xf32>
    %18 = vector.broadcast %0 : vector<16x1xf32> to vector<16x128xf32>
    %19 = arith.addf %17, %18 : vector<16x128xf32>
    %cst_24 = arith.constant 0.000000e+00 : f32
    %20 = vector.broadcast %cst_24 : f32 to vector<16x128xf32>
    %21 = arith.maximumf %19, %20 : vector<16x128xf32>
    %22 = vector.broadcast %1 : vector<16x1xf32> to vector<16x128xf32>
    %23 = arith.mulf %21, %22 : vector<16x128xf32>
    %24 = vector.broadcast %2 : vector<16x1xf32> to vector<16x128xf32>
    %25 = arith.addf %23, %24 : vector<16x128xf32>
    %cst_25 = arith.constant dense<0.000000e+00> : vector<16xf32>
    %26 = vector.multi_reduction <add>, %25, %cst_25 [1] : vector<16x128xf32> to vector<16xf32>
    %27 = vector.shape_cast %26 : vector<16xf32> to vector<16x1xf32>
    %cst_26 = arith.constant 9.600000e+01 : f32
    %28 = vector.broadcast %cst_26 : f32 to vector<16x1xf32>
    %29 = arith.mulf %28, %6 : vector<16x1xf32>
    %30 = arith.subf %27, %29 : vector<16x1xf32>
    %cst_27 = arith.constant 3.125000e-02 : f32
    %31 = vector.broadcast %cst_27 : f32 to vector<16x1xf32>
    %32 = arith.mulf %30, %31 : vector<16x1xf32>
    %cst_28 = arith.constant dense<0.000000e+00> : vector<4x1xf32>
    %33 = tpu.matmul %12, %32, %cst_28 {dimension_numbers = #tpu.dot_dimension_numbers<[1], [0], [0], [1], [0, 0, 1, 1], [], []>} : vector<4x16xf32>, vector<16x1xf32>, vector<4x1xf32> -> vector<4x1xf32>
    %34 = arith.addf %33, %13 : vector<4x1xf32>
    %cst_29 = arith.constant dense<0xFF800000> : vector<1xf32>
    %35 = vector.multi_reduction <maximumf>, %34, %cst_29 [0] : vector<4x1xf32> to vector<1xf32>
    %36 = vector.shape_cast %35 : vector<1xf32> to vector<1x1xf32>
    %37 = vector.broadcast %36 : vector<1x1xf32> to vector<4x1xf32>
    %38 = arith.subf %34, %37 : vector<4x1xf32>
    %39 = math.exp %38 : vector<4x1xf32>
    %cst_30 = arith.constant dense<0.000000e+00> : vector<1xf32>
    %40 = vector.multi_reduction <add>, %39, %cst_30 [0] : vector<4x1xf32> to vector<1xf32>
    %41 = vector.shape_cast %40 : vector<1xf32> to vector<1x1xf32>
    %42 = vector.broadcast %41 : vector<1x1xf32> to vector<4x1xf32>
    %43 = arith.divf %39, %42 : vector<4x1xf32>
    %c0_31 = arith.constant 0 : index
    %c0_32 = arith.constant 0 : index
    %c0_33 = arith.constant 0 : index
    %44 = vector.load %arg7[%c0_31, %c0_32, %c0_33] : memref<4x16x256xbf16, #tpu.memory_space<vmem>>, vector<1x16x256xbf16>
    %45 = vector.shape_cast %44 : vector<1x16x256xbf16> to vector<16x256xbf16>
    %46 = arith.extf %45 : vector<16x256xbf16> to vector<16x256xf32>
    %47 = vector.extract_strided_slice %43 {offsets = [0, 0], sizes = [1, 1], strides = [1, 1]} : vector<4x1xf32> to vector<1x1xf32>
    %48 = vector.broadcast %47 : vector<1x1xf32> to vector<16x256xf32>
    %49 = arith.mulf %46, %48 : vector<16x256xf32>
    %c1_34 = arith.constant 1 : index
    %c0_35 = arith.constant 0 : index
    %c0_36 = arith.constant 0 : index
    %50 = vector.load %arg7[%c1_34, %c0_35, %c0_36] : memref<4x16x256xbf16, #tpu.memory_space<vmem>>, vector<1x16x256xbf16>
    %51 = vector.shape_cast %50 : vector<1x16x256xbf16> to vector<16x256xbf16>
    %52 = arith.extf %51 : vector<16x256xbf16> to vector<16x256xf32>
    %53 = vector.extract_strided_slice %43 {offsets = [1, 0], sizes = [1, 1], strides = [1, 1]} : vector<4x1xf32> to vector<1x1xf32>
    %54 = vector.broadcast %53 : vector<1x1xf32> to vector<16x256xf32>
    %55 = arith.mulf %52, %54 : vector<16x256xf32>
    %56 = arith.addf %49, %55 : vector<16x256xf32>
    %c2_37 = arith.constant 2 : index
    %c0_38 = arith.constant 0 : index
    %c0_39 = arith.constant 0 : index
    %57 = vector.load %arg7[%c2_37, %c0_38, %c0_39] : memref<4x16x256xbf16, #tpu.memory_space<vmem>>, vector<1x16x256xbf16>
    %58 = vector.shape_cast %57 : vector<1x16x256xbf16> to vector<16x256xbf16>
    %59 = arith.extf %58 : vector<16x256xbf16> to vector<16x256xf32>
    %60 = vector.extract_strided_slice %43 {offsets = [2, 0], sizes = [1, 1], strides = [1, 1]} : vector<4x1xf32> to vector<1x1xf32>
    %61 = vector.broadcast %60 : vector<1x1xf32> to vector<16x256xf32>
    %62 = arith.mulf %59, %61 : vector<16x256xf32>
    %63 = arith.addf %56, %62 : vector<16x256xf32>
    %c3_40 = arith.constant 3 : index
    %c0_41 = arith.constant 0 : index
    %c0_42 = arith.constant 0 : index
    %64 = vector.load %arg7[%c3_40, %c0_41, %c0_42] : memref<4x16x256xbf16, #tpu.memory_space<vmem>>, vector<1x16x256xbf16>
    %65 = vector.shape_cast %64 : vector<1x16x256xbf16> to vector<16x256xbf16>
    %66 = arith.extf %65 : vector<16x256xbf16> to vector<16x256xf32>
    %67 = vector.extract_strided_slice %43 {offsets = [3, 0], sizes = [1, 1], strides = [1, 1]} : vector<4x1xf32> to vector<1x1xf32>
    %68 = vector.broadcast %67 : vector<1x1xf32> to vector<16x256xf32>
    %69 = arith.mulf %66, %68 : vector<16x256xf32>
    %70 = arith.addf %63, %69 : vector<16x256xf32>
    %71 = vector.extract_strided_slice %70 {offsets = [0, 0], sizes = [16, 128], strides = [1, 1]} : vector<16x256xf32> to vector<16x128xf32>
    %72 = vector.extract_strided_slice %70 {offsets = [0, 128], sizes = [16, 128], strides = [1, 1]} : vector<16x256xf32> to vector<16x128xf32>
    %73 = arith.truncf %25 : vector<16x128xf32> to vector<16x128xbf16>
    %cst_43 = arith.constant dense<0.000000e+00> : vector<16x256xf32>
    %74 = tpu.matmul %73, %9, %cst_43 {dimension_numbers = #tpu.dot_dimension_numbers<[1], [0], [0], [1], [0, 0, 1, 1], [], []>} : vector<16x128xbf16>, vector<128x256xbf16>, vector<16x256xf32> -> vector<16x256xf32>
    %75 = vector.extract_strided_slice %74 {offsets = [0, 0], sizes = [16, 128], strides = [1, 1]} : vector<16x256xf32> to vector<16x128xf32>
    %76 = vector.extract_strided_slice %74 {offsets = [0, 128], sizes = [16, 128], strides = [1, 1]} : vector<16x256xf32> to vector<16x128xf32>
    %77 = arith.mulf %75, %71 : vector<16x128xf32>
    %78 = arith.mulf %76, %72 : vector<16x128xf32>
    %79 = arith.subf %77, %78 : vector<16x128xf32>
    %80 = arith.mulf %75, %72 : vector<16x128xf32>
    %81 = arith.mulf %76, %71 : vector<16x128xf32>
    %82 = arith.addf %80, %81 : vector<16x128xf32>
    %83 = arith.truncf %79 : vector<16x128xf32> to vector<16x128xbf16>
    %cst_44 = arith.constant dense<0.000000e+00> : vector<16x128xf32>
    %84 = tpu.matmul %83, %10, %cst_44 {dimension_numbers = #tpu.dot_dimension_numbers<[1], [0], [0], [1], [0, 0, 1, 1], [], []>} : vector<16x128xbf16>, vector<128x128xbf16>, vector<16x128xf32> -> vector<16x128xf32>
    %85 = arith.truncf %82 : vector<16x128xf32> to vector<16x128xbf16>
    %cst_45 = arith.constant dense<0.000000e+00> : vector<16x128xf32>
    %86 = tpu.matmul %85, %11, %cst_45 {dimension_numbers = #tpu.dot_dimension_numbers<[1], [0], [0], [1], [0, 0, 1, 1], [], []>} : vector<16x128xbf16>, vector<128x128xbf16>, vector<16x128xf32> -> vector<16x128xf32>
    %87 = arith.addf %84, %86 : vector<16x128xf32>
    %cst_46 = arith.constant 0.000000e+00 : f32
    %88 = vector.broadcast %cst_46 : f32 to vector<16x128xf32>
    %89 = arith.maximumf %87, %88 : vector<16x128xf32>
    %90 = arith.truncf %89 : vector<16x128xf32> to vector<16x128xbf16>
    %cst_47 = arith.constant dense<0.000000e+00> : vector<16x128xf32>
    %91 = tpu.matmul %8, %90, %cst_47 {dimension_numbers = #tpu.dot_dimension_numbers<[1], [0], [0], [1], [0, 0, 1, 1], [], []>} : vector<16x16xbf16>, vector<16x128xbf16>, vector<16x128xf32> -> vector<16x128xf32>
    %92 = vector.broadcast %3 : vector<16x1xf32> to vector<16x128xf32>
    %93 = arith.addf %91, %92 : vector<16x128xf32>
    %cst_48 = arith.constant 0.000000e+00 : f32
    %94 = vector.broadcast %cst_48 : f32 to vector<16x128xf32>
    %95 = arith.maximumf %93, %94 : vector<16x128xf32>
    %96 = vector.broadcast %4 : vector<16x1xf32> to vector<16x128xf32>
    %97 = arith.mulf %95, %96 : vector<16x128xf32>
    %98 = vector.broadcast %5 : vector<16x1xf32> to vector<16x128xf32>
    %99 = arith.addf %97, %98 : vector<16x128xf32>
    %100 = arith.addf %15, %99 : vector<16x128xf32>
    %101 = vector.extract_strided_slice %100 {offsets = [0, 0], sizes = [16, 32], strides = [1, 1]} : vector<16x128xf32> to vector<16x32xf32>
    %c0_49 = arith.constant 0 : index
    %c0_50 = arith.constant 0 : index
    %c0_51 = arith.constant 0 : index
    %102 = vector.load %arg11[%c0_49, %c0_50, %c0_51] : memref<1x16x32xf32, #tpu.memory_space<vmem>>, vector<1x16x32xf32>
    %103 = vector.shape_cast %102 : vector<1x16x32xf32> to vector<16x32xf32>
    %104 = vector.shape_cast %101 : vector<16x32xf32> to vector<1x16x32xf32>
    tpu.vector_store %arg11[%c0_49, %c0_50, %c0_51], %104 {strides = array<i32>} : memref<1x16x32xf32, #tpu.memory_space<vmem>>, vector<1x16x32xf32>,
    return
  }
  func.func @transform_0(%arg0: i32) -> (i32, i32, i32) {
    %c0_i32 = arith.constant 0 : i32
    %c0_i32_0 = arith.constant 0 : i32
    %c0_i32_1 = arith.constant 0 : i32
    return %arg0, %c0_i32, %c0_i32_0 : i32, i32, i32
  }
  func.func @transform_1(%arg0: i32) -> (i32, i32) {
    %c0_i32 = arith.constant 0 : i32
    %c0_i32_0 = arith.constant 0 : i32
    %c0_i32_1 = arith.constant 0 : i32
    return %c0_i32, %c0_i32_0 : i32, i32
  }
  func.func @transform_2(%arg0: i32) -> (i32, i32) {
    %c0_i32 = arith.constant 0 : i32
    %c0_i32_0 = arith.constant 0 : i32
    %c0_i32_1 = arith.constant 0 : i32
    return %c0_i32, %c0_i32_0 : i32, i32
  }
  func.func @transform_3(%arg0: i32) -> (i32, i32) {
    %c0_i32 = arith.constant 0 : i32
    %c0_i32_0 = arith.constant 0 : i32
    %c0_i32_1 = arith.constant 0 : i32
    return %c0_i32, %c0_i32_0 : i32, i32
  }
  func.func @transform_4(%arg0: i32) -> (i32, i32) {
    %c0_i32 = arith.constant 0 : i32
    %c0_i32_0 = arith.constant 0 : i32
    %c0_i32_1 = arith.constant 0 : i32
    return %c0_i32, %c0_i32_0 : i32, i32
  }
  func.func @transform_5(%arg0: i32) -> (i32, i32) {
    %c0_i32 = arith.constant 0 : i32
    %c0_i32_0 = arith.constant 0 : i32
    %c0_i32_1 = arith.constant 0 : i32
    return %c0_i32, %c0_i32_0 : i32, i32
  }
  func.func @transform_6(%arg0: i32) -> (i32, i32, i32) {
    %c0_i32 = arith.constant 0 : i32
    %c0_i32_0 = arith.constant 0 : i32
    %c0_i32_1 = arith.constant 0 : i32
    %c0_i32_2 = arith.constant 0 : i32
    return %c0_i32, %c0_i32_0, %c0_i32_1 : i32, i32, i32
  }
  func.func @transform_7(%arg0: i32) -> (i32, i32) {
    %c0_i32 = arith.constant 0 : i32
    %c0_i32_0 = arith.constant 0 : i32
    %c0_i32_1 = arith.constant 0 : i32
    return %c0_i32, %c0_i32_0 : i32, i32
  }
  func.func @transform_8(%arg0: i32) -> (i32, i32) {
    %c0_i32 = arith.constant 0 : i32
    %c0_i32_0 = arith.constant 0 : i32
    %c0_i32_1 = arith.constant 0 : i32
    return %c0_i32, %c0_i32_0 : i32, i32
  }
  func.func @transform_9(%arg0: i32) -> (i32, i32) {
    %c0_i32 = arith.constant 0 : i32
    %c0_i32_0 = arith.constant 0 : i32
    %c0_i32_1 = arith.constant 0 : i32
    return %c0_i32, %c0_i32_0 : i32, i32
  }
  func.func @transform_10(%arg0: i32) -> (i32, i32, i32) {
    %c0_i32 = arith.constant 0 : i32
    %c0_i32_0 = arith.constant 0 : i32
    %c0_i32_1 = arith.constant 0 : i32
    return %arg0, %c0_i32, %c0_i32_0 : i32, i32, i32
  }
}

</mosaic_0001>

<llo_original>
// kernel: tpu_custom_call.1
$region0: #{tpu_custom_call.1}
  #allocation0 [shape = 'u32[]', space=smem, size = 0x4, offset = 0x4, fixed_abs, tag = 'smem constant byte address 0x4 - core index']
  #allocation1 [shape = 'u32[144,128]{1,0:T(1,128)}', space=vmem, size = 0x12000, scoped, tag = 'internal scratch']
  %s0 = inlined_call_operand.hbm [shape: f32[4,16,128], index: 0, kind: input, shape index: {}]
  %s1 = inlined_call_operand.vmem [shape: bf16[16,16], index: 1, kind: input, shape index: {}]
  %s2 = inlined_call_operand.vmem [shape: bf16[16,16], index: 2, kind: input, shape index: {}]
  %s3 = inlined_call_operand.vmem [shape: f32[16,8], index: 3, kind: input, shape index: {}]
  %s4 = inlined_call_operand.vmem [shape: f32[4,16], index: 4, kind: input, shape index: {}]
  %s5 = inlined_call_operand.vmem [shape: f32[4,1], index: 5, kind: input, shape index: {}]
  %s6 = inlined_call_operand.hbm [shape: bf16[4,16,256], index: 6, kind: input, shape index: {}]
  %s7 = inlined_call_operand.hbm [shape: bf16[128,256], index: 7, kind: input, shape index: {}]
  %s8 = inlined_call_operand.hbm [shape: bf16[128,128], index: 8, kind: input, shape index: {}]
  %s9 = inlined_call_operand.hbm [shape: bf16[128,128], index: 9, kind: input, shape index: {}]
  %s10 = inlined_call_operand.hbm [shape: f32[4,16,32], index: 10, kind: output, shape index: {}]
  %s11 = sld [smem:[#allocation0]]
  $region93: #{tpu_custom_call.1} parent=0
    _
  %s13 = ssub.s32 1, %s11
  %s14 = scalar_select 0, %s13, %s11
  $region1: #{tpu_custom_call.1} parent=0
    #allocation2 [shape = 'u8[16384]{0}', space=vmem, size = 0x4000, scoped, tag = 'input window, operand 0']
    #allocation3 [shape = 's32[2]{0}', space=sflag, size = 0x8, scoped, tag = 'scoped memory for tpu_custom_call.1']
    #allocation4 [shape = 's32[2]{0}', space=sflag, size = 0x8, scoped, tag = 'scoped memory for tpu_custom_call.1']
    #allocation5 [shape = 'u8[32768]{0}', space=vmem, size = 0x8000, scoped, tag = 'input window, operand 6, single buffered']
    #allocation6 [shape = 's32[1]{0}', space=sflag, size = 0x4, scoped, tag = 'scoped memory for tpu_custom_call.1']
    #allocation7 [shape = 'u8[65536]{0}', space=vmem, size = 0x10000, scoped, tag = 'input window, operand 7, single buffered']
    #allocation8 [shape = 'u8[32768]{0}', space=vmem, size = 0x8000, scoped, tag = 'input window, operand 8, single buffered']
    #allocation9 [shape = 's32[1]{0}', space=sflag, size = 0x4, scoped, tag = 'scoped memory for tpu_custom_call.1']
    #allocation10 [shape = 'u8[32768]{0}', space=vmem, size = 0x8000, scoped, tag = 'input window, operand 9, single buffered']
    #allocation11 [shape = 'u8[16384]{0}', space=vmem, size = 0x4000, scoped, tag = 'output window, operand 0']
    %15 = vsyncpa [#allocation3], 0
    %s16 = scalar_lea.sflag [#allocation3], 1
    %17 = vsyncpa %s16, 0
    %18 = vsyncpa [#allocation6], 0
    %19 = vsyncpa [#allocation9], 0
    %20 = vsyncpa [#allocation4], 0
    %s21 = scalar_lea.sflag [#allocation4], 1
    %22 = vsyncpa %s21, 0
    loop: start=0, step=1, limit=6
    $region2: #{tpu_custom_call.1} parent=1 // loop_pre_header
      _
    $region3: #{tpu_custom_call.1} parent=1 // loop_header
      %s24 = sphi 0, %s28
      %p25 = scmp.ge.s32.totalorder %s24, 6
      %s34 = sphi 0, %s36
      %s37 = sphi 0, %s34
      %s38 = sphi 0, %s37
      %s54 = sphi 0, %s38
      %s58 = sphi 0, %s58
      %s60 = sphi 0, %s58
      %s61 = sphi 0, %s60
      %s75 = sphi 0, %s61
      %s79 = sphi 0, %s79
      %s81 = sphi 0, %s79
      %s82 = sphi 0, %s81
      %s96 = sphi 0, %s82
      %s100 = sphi 0, %s100
      %s102 = sphi 0, %s100
      %s103 = sphi 0, %s102
      %s117 = sphi 0, %s103
      %s121 = sphi 0, %s121
      %s123 = sphi 0, %s121
      %s124 = sphi 0, %s123
      %s138 = sphi 0, %s124
      %s142 = sphi 0, %s142
      %s144 = sphi 0, %s142
      %s145 = sphi 0, %s144
      %s159 = sphi 0, %s145
      %s163 = sphi 0, %s163
      %s165 = sphi 0, %s163
      %s166 = sphi 0, %s165
      %s180 = sphi 0, %s166
      %s184 = sphi 0, %s184
      %s186 = sphi 0, %s184
      %s187 = sphi 0, %s186
      %s201 = sphi 0, %s187
      %s205 = sphi 0, %s205
      %s207 = sphi 0, %s205
      %s208 = sphi 0, %s207
      %s222 = sphi 0, %s208
      %s226 = sphi 0, %s226
      %s228 = sphi 0, %s226
      %s229 = sphi 0, %s228
      %s243 = sphi 0, %s229
      %s249 = sphi 0, %s251
      %s252 = sphi 0, %s249
      %s253 = sphi 0, %s252
      %s269 = sphi 0, %s253
    $region4: #{tpu_custom_call.1} parent=1 // loop_header_branch
      %27 = sbr.rel (%p25) target = $region8
    $region5: #{tpu_custom_call.1} parent=1 // loop_body
      %s29 = ssub.s32 %s24, 1
      %s30 = ssub.s32 %s24, 2
      %s31 = sadd.s32 %s24, 1
      %s32 = ssub.s32 %s24, %s31
      %p33 = scmp.eq.s32.totalorder %s32, 0
      %s35 = sadd.s32 %s34, 1
      %s36 = scalar_select %p33, %s34, %s35
      %p39 = pneg %p33
      %p40 = scmp.eq.s32.totalorder %s24, 3
      %p41 = por %p39, %p40
      %p42 = scmp.ne.s32.totalorder %s34, %s37
      %p43 = scmp.eq.s32.totalorder %s24, 0
      %p44 = por %p42, %p43
      %p45 = scmp.ne.s32.totalorder %s34, %s37
      %p46 = scmp.eq.s32.totalorder %s29, 3
      %p47 = por %p45, %p46
      %p48 = scmp.ne.s32.totalorder %s37, %s38
      %p49 = scmp.eq.s32.totalorder %s29, 0
      %p50 = por %p48, %p49
      %p51 = scmp.ne.s32.totalorder %s37, %s38
      %p52 = scmp.eq.s32.totalorder %s30, 3
      %p53 = por %p51, %p52
      %p55 = scmp.ne.s32.totalorder %s38, %s54
      %p56 = scmp.eq.s32.totalorder %s30, 0
      %p57 = por %p55, %p56
      %s59 = sadd.s32 %s58, 1
      %p62 = scmp.eq.s32.totalorder %s24, 3
      %p63 = scmp.ne.s32.totalorder %s58, %s60
      %p64 = scmp.eq.s32.totalorder %s24, 0
      %p65 = por %p63, %p64
      %p66 = scmp.ne.s32.totalorder %s58, %s60
      %p67 = scmp.eq.s32.totalorder %s29, 3
      %p68 = por %p66, %p67
      %p69 = scmp.ne.s32.totalorder %s60, %s61
      %p70 = scmp.eq.s32.totalorder %s29, 0
      %p71 = por %p69, %p70
      %p72 = scmp.ne.s32.totalorder %s60, %s61
      %p73 = scmp.eq.s32.totalorder %s30, 3
      %p74 = por %p72, %p73
      %p76 = scmp.ne.s32.totalorder %s61, %s75
      %p77 = scmp.eq.s32.totalorder %s30, 0
      %p78 = por %p76, %p77
      %s80 = sadd.s32 %s79, 1
      %p83 = scmp.eq.s32.totalorder %s24, 3
      %p84 = scmp.ne.s32.totalorder %s79, %s81
      %p85 = scmp.eq.s32.totalorder %s24, 0
      %p86 = por %p84, %p85
      %p87 = scmp.ne.s32.totalorder %s79, %s81
      %p88 = scmp.eq.s32.totalorder %s29, 3
      %p89 = por %p87, %p88
      %p90 = scmp.ne.s32.totalorder %s81, %s82
      %p91 = scmp.eq.s32.totalorder %s29, 0
      %p92 = por %p90, %p91
      %p93 = scmp.ne.s32.totalorder %s81, %s82
      %p94 = scmp.eq.s32.totalorder %s30, 3
      %p95 = por %p93, %p94
      %p97 = scmp.ne.s32.totalorder %s82, %s96
      %p98 = scmp.eq.s32.totalorder %s30, 0
      %p99 = por %p97, %p98
      %s101 = sadd.s32 %s100, 1
      %p104 = scmp.eq.s32.totalorder %s24, 3
      %p105 = scmp.ne.s32.totalorder %s100, %s102
      %p106 = scmp.eq.s32.totalorder %s24, 0
      %p107 = por %p105, %p106
      %p108 = scmp.ne.s32.totalorder %s100, %s102
      %p109 = scmp.eq.s32.totalorder %s29, 3
      %p110 = por %p108, %p109
      %p111 = scmp.ne.s32.totalorder %s102, %s103
      %p112 = scmp.eq.s32.totalorder %s29, 0
      %p113 = por %p111, %p112
      %p114 = scmp.ne.s32.totalorder %s102, %s103
      %p115 = scmp.eq.s32.totalorder %s30, 3
      %p116 = por %p114, %p115
      %p118 = scmp.ne.s32.totalorder %s103, %s117
      %p119 = scmp.eq.s32.totalorder %s30, 0
      %p120 = por %p118, %p119
      %s122 = sadd.s32 %s121, 1
      %p125 = scmp.eq.s32.totalorder %s24, 3
      %p126 = scmp.ne.s32.totalorder %s121, %s123
      %p127 = scmp.eq.s32.totalorder %s24, 0
      %p128 = por %p126, %p127
      %p129 = scmp.ne.s32.totalorder %s121, %s123
      %p130 = scmp.eq.s32.totalorder %s29, 3
      %p131 = por %p129, %p130
      %p132 = scmp.ne.s32.totalorder %s123, %s124
      %p133 = scmp.eq.s32.totalorder %s29, 0
      %p134 = por %p132, %p133
      %p135 = scmp.ne.s32.totalorder %s123, %s124
      %p136 = scmp.eq.s32.totalorder %s30, 3
      %p137 = por %p135, %p136
      %p139 = scmp.ne.s32.totalorder %s124, %s138
      %p140 = scmp.eq.s32.totalorder %s30, 0
      %p141 = por %p139, %p140
      %s143 = sadd.s32 %s142, 1
      %p146 = scmp.eq.s32.totalorder %s24, 3
      %p147 = scmp.ne.s32.totalorder %s142, %s144
      %p148 = scmp.eq.s32.totalorder %s24, 0
      %p149 = por %p147, %p148
      %p150 = scmp.ne.s32.totalorder %s142, %s144
      %p151 = scmp.eq.s32.totalorder %s29, 3
      %p152 = por %p150, %p151
      %p153 = scmp.ne.s32.totalorder %s144, %s145
      %p154 = scmp.eq.s32.totalorder %s29, 0
      %p155 = por %p153, %p154
      %p156 = scmp.ne.s32.totalorder %s144, %s145
      %p157 = scmp.eq.s32.totalorder %s30, 3
      %p158 = por %p156, %p157
      %p160 = scmp.ne.s32.totalorder %s145, %s159
      %p161 = scmp.eq.s32.totalorder %s30, 0
      %p162 = por %p160, %p161
      %s164 = sadd.s32 %s163, 1
      %p167 = scmp.eq.s32.totalorder %s24, 3
      %p168 = scmp.ne.s32.totalorder %s163, %s165
      %p169 = scmp.eq.s32.totalorder %s24, 0
      %p170 = por %p168, %p169
      %p171 = scmp.ne.s32.totalorder %s163, %s165
      %p172 = scmp.eq.s32.totalorder %s29, 3
      %p173 = por %p171, %p172
      %p174 = scmp.ne.s32.totalorder %s165, %s166
      %p175 = scmp.eq.s32.totalorder %s29, 0
      %p176 = por %p174, %p175
      %p177 = scmp.ne.s32.totalorder %s165, %s166
      %p178 = scmp.eq.s32.totalorder %s30, 3
      %p179 = por %p177, %p178
      %p181 = scmp.ne.s32.totalorder %s166, %s180
      %p182 = scmp.eq.s32.totalorder %s30, 0
      %p183 = por %p181, %p182
      %s185 = sadd.s32 %s184, 1
      %p188 = scmp.eq.s32.totalorder %s24, 3
      %p189 = scmp.ne.s32.totalorder %s184, %s186
      %p190 = scmp.eq.s32.totalorder %s24, 0
      %p191 = por %p189, %p190
      %p192 = scmp.ne.s32.totalorder %s184, %s186
      %p193 = scmp.eq.s32.totalorder %s29, 3
      %p194 = por %p192, %p193
      %p195 = scmp.ne.s32.totalorder %s186, %s187
      %p196 = scmp.eq.s32.totalorder %s29, 0
      %p197 = por %p195, %p196
      %p198 = scmp.ne.s32.totalorder %s186, %s187
      %p199 = scmp.eq.s32.totalorder %s30, 3
      %p200 = por %p198, %p199
      %p202 = scmp.ne.s32.totalorder %s187, %s201
      %p203 = scmp.eq.s32.totalorder %s30, 0
      %p204 = por %p202, %p203
      %s206 = sadd.s32 %s205, 1
      %p209 = scmp.eq.s32.totalorder %s24, 3
      %p210 = scmp.ne.s32.totalorder %s205, %s207
      %p211 = scmp.eq.s32.totalorder %s24, 0
      %p212 = por %p210, %p211
      %p213 = scmp.ne.s32.totalorder %s205, %s207
      %p214 = scmp.eq.s32.totalorder %s29, 3
      %p215 = por %p213, %p214
      %p216 = scmp.ne.s32.totalorder %s207, %s208
      %p217 = scmp.eq.s32.totalorder %s29, 0
      %p218 = por %p216, %p217
      %p219 = scmp.ne.s32.totalorder %s207, %s208
      %p220 = scmp.eq.s32.totalorder %s30, 3
      %p221 = por %p219, %p220
      %p223 = scmp.ne.s32.totalorder %s208, %s222
      %p224 = scmp.eq.s32.totalorder %s30, 0
      %p225 = por %p223, %p224
      %s227 = sadd.s32 %s226, 1
      %p230 = scmp.eq.s32.totalorder %s24, 3
      %p231 = scmp.ne.s32.totalorder %s226, %s228
      %p232 = scmp.eq.s32.totalorder %s24, 0
      %p233 = por %p231, %p232
      %p234 = scmp.ne.s32.totalorder %s226, %s228
      %p235 = scmp.eq.s32.totalorder %s29, 3
      %p236 = por %p234, %p235
      %p237 = scmp.ne.s32.totalorder %s228, %s229
      %p238 = scmp.eq.s32.totalorder %s29, 0
      %p239 = por %p237, %p238
      %p240 = scmp.ne.s32.totalorder %s228, %s229
      %p241 = scmp.eq.s32.totalorder %s30, 3
      %p242 = por %p240, %p241
      %p244 = scmp.ne.s32.totalorder %s229, %s243
      %p245 = scmp.eq.s32.totalorder %s30, 0
      %p246 = por %p244, %p245
      %s247 = ssub.s32 %s24, %s31
      %p248 = scmp.eq.s32.totalorder %s247, 0
      %s250 = sadd.s32 %s249, 1
      %s251 = scalar_select %p248, %s249, %s250
      %p254 = pneg %p248
      %p255 = scmp.eq.s32.totalorder %s24, 3
      %p256 = por %p254, %p255
      %p257 = scmp.ne.s32.totalorder %s249, %s252
      %p258 = scmp.eq.s32.totalorder %s24, 0
      %p259 = por %p257, %p258
      %p260 = scmp.ne.s32.totalorder %s249, %s252
      %p261 = scmp.eq.s32.totalorder %s29, 3
      %p262 = por %p260, %p261
      %p263 = scmp.ne.s32.totalorder %s252, %s253
      %p264 = scmp.eq.s32.totalorder %s29, 0
      %p265 = por %p263, %p264
      %p266 = scmp.ne.s32.totalorder %s252, %s253
      %p267 = scmp.eq.s32.totalorder %s30, 3
      %p268 = por %p266, %p267
      %p270 = scmp.ne.s32.totalorder %s253, %s269
      %p271 = scmp.eq.s32.totalorder %s30, 0
      %p272 = por %p270, %p271
      %p273 = scmp.le.s32.totalorder 1, %s24
      %p274 = scmp.lt.s32.totalorder %s24, 5
      %p275 = pnand %p273, %p274
      %p276 = pneg %p275
      // Predicated region
      $region9: #{tpu_custom_call.1} parent=5 // pred_check
        _
      $region10: #{tpu_custom_call.1} parent=5 // pred_check_branch
        %278 = sbr.rel (%p275) target = $region12
      $region11: #{tpu_custom_call.1} parent=5 // pred_region
        %s279 = ssub.s32 %s24, 1
        // Predicated region
        $region13: #{tpu_custom_call.1} parent=11 // pred_check
          %p280 = pneg %p71
        $region14: #{tpu_custom_call.1} parent=11 // pred_check_branch
          %282 = sbr.rel (%p280) target = $region16
        $region15: #{tpu_custom_call.1} parent=11 // pred_region
          _
        $region16: #{tpu_custom_call.1} parent=11 // pred_fallthru
          _
        // Predicated region
        $region17: #{tpu_custom_call.1} parent=11 // pred_check
          %p283 = pneg %p92
        $region18: #{tpu_custom_call.1} parent=11 // pred_check_branch
          %285 = sbr.rel (%p283) target = $region20
        $region19: #{tpu_custom_call.1} parent=11 // pred_region
          _
        $region20: #{tpu_custom_call.1} parent=11 // pred_fallthru
          _
        // Predicated region
        $region21: #{tpu_custom_call.1} parent=11 // pred_check
          %p286 = pneg %p113
        $region22: #{tpu_custom_call.1} parent=11 // pred_check_branch
          %288 = sbr.rel (%p286) target = $region24
        $region23: #{tpu_custom_call.1} parent=11 // pred_region
          _
        $region24: #{tpu_custom_call.1} parent=11 // pred_fallthru
          _
        // Predicated region
        $region25: #{tpu_custom_call.1} parent=11 // pred_check
          %p289 = pneg %p134
        $region26: #{tpu_custom_call.1} parent=11 // pred_check_branch
          %291 = sbr.rel (%p289) target = $region28
        $region27: #{tpu_custom_call.1} parent=11 // pred_region
          _
        $region28: #{tpu_custom_call.1} parent=11 // pred_fallthru
          _
        // Predicated region
        $region29: #{tpu_custom_call.1} parent=11 // pred_check
          %p292 = pneg %p155
        $region30: #{tpu_custom_call.1} parent=11 // pred_check_branch
          %294 = sbr.rel (%p292) target = $region32
        $region31: #{tpu_custom_call.1} parent=11 // pred_region
          _
        $region32: #{tpu_custom_call.1} parent=11 // pred_fallthru
          _
        // Predicated region
        $region33: #{tpu_custom_call.1} parent=11 // pred_check
          %p295 = pneg %p176
        $region34: #{tpu_custom_call.1} parent=11 // pred_check_branch
          %297 = sbr.rel (%p295) target = $region36
        $region35: #{tpu_custom_call.1} parent=11 // pred_region
          %s299 = ssub.s32 1024, 1024
          %300 = vsyncadd [#allocation6], %s299
          %s301 = sshll.u32 [#allocation5], 4
          %s302 = int_to_ptr.vmem [resolvable:$true] %s301
          %307 = dma.hbm_to_vmem [thread:$0]  %s6, 1024, %s302, [#allocation6], 128, 128, 8
        $region36: #{tpu_custom_call.1} parent=11 // pred_fallthru
          _
        // Predicated region
        $region37: #{tpu_custom_call.1} parent=11 // pred_check
          %p308 = pneg %p197
        $region38: #{tpu_custom_call.1} parent=11 // pred_check_branch
          %310 = sbr.rel (%p308) target = $region40
        $region39: #{tpu_custom_call.1} parent=11 // pred_region
          %s312 = ssub.s32 2048, 2048
          %313 = vsyncadd [#allocation6], %s312
          %s314 = sshll.u32 [#allocation7], 4
          %s315 = int_to_ptr.vmem [resolvable:$true] %s314
          %320 = dma.hbm_to_vmem [thread:$0]  %s7, 2048, %s315, [#allocation6], 128, 128, 8
        $region40: #{tpu_custom_call.1} parent=11 // pred_fallthru
          _
        // Predicated region
        $region41: #{tpu_custom_call.1} parent=11 // pred_check
          %p321 = pneg %p218
        $region42: #{tpu_custom_call.1} parent=11 // pred_check_branch
          %323 = sbr.rel (%p321) target = $region44
        $region43: #{tpu_custom_call.1} parent=11 // pred_region
          %s325 = ssub.s32 1024, 1024
          %326 = vsyncadd [#allocation9], %s325
          %s327 = sshll.u32 [#allocation8], 4
          %s328 = int_to_ptr.vmem [resolvable:$true] %s327
          %333 = dma.hbm_to_vmem [thread:$0]  %s8, 1024, %s328, [#allocation9], 64, 64, 4
        $region44: #{tpu_custom_call.1} parent=11 // pred_fallthru
          _
        // Predicated region
        $region45: #{tpu_custom_call.1} parent=11 // pred_check
          %p334 = pneg %p239
        $region46: #{tpu_custom_call.1} parent=11 // pred_check_branch
          %336 = sbr.rel (%p334) target = $region48
        $region47: #{tpu_custom_call.1} parent=11 // pred_region
          %s338 = ssub.s32 1024, 1024
          %339 = vsyncadd [#allocation9], %s338
          %s340 = sshll.u32 [#allocation10], 4
          %s341 = int_to_ptr.vmem [resolvable:$true] %s340
          %346 = dma.hbm_to_vmem [thread:$0]  %s9, 1024, %s341, [#allocation9], 64, 64, 4
        $region48: #{tpu_custom_call.1} parent=11 // pred_fallthru
          _
      $region12: #{tpu_custom_call.1} parent=5 // pred_fallthru
        _
      %p347 = scmp.lt.s32.totalorder %s24, 4
      // Predicated region
      $region49: #{tpu_custom_call.1} parent=5 // pred_check
        %p348 = pneg %p347
      $region50: #{tpu_custom_call.1} parent=5 // pred_check_branch
        %350 = sbr.rel (%p348) target = $region52
      $region51: #{tpu_custom_call.1} parent=5 // pred_region
        // Predicated region
        $region53: #{tpu_custom_call.1} parent=51 // pred_check
          %p351 = pneg %p44
        $region54: #{tpu_custom_call.1} parent=51 // pred_check_branch
          %353 = sbr.rel (%p351) target = $region56
        $region55: #{tpu_custom_call.1} parent=51 // pred_region
          %s354 = sand.u32 %s34, 1
          %s355 = scalar_lea.sflag [#allocation3], %s354
          %s356 = sand.u32 %s34, 1
          %s357 = smul.addr %s356, 16
          %s358 = scalar_lea.vmem [#allocation2], %s357
          %s360 = ssub.s32 256, 256
          %361 = vsyncadd %s355, %s360
          %s362 = smul.addr %s24, 2
          %s363 = smul.addr %s362, 128
          %s364 = scalar_lea.hbm %s0, %s363
          %s365 = sshll.u32 %s358, 4
          %s366 = int_to_ptr.vmem [resolvable:$true] %s365
          %371 = dma.hbm_to_vmem [thread:$0]  %s364, 256, %s366, %s355, 128, 128, 8
        $region56: #{tpu_custom_call.1} parent=51 // pred_fallthru
          _
      $region52: #{tpu_custom_call.1} parent=5 // pred_fallthru
        _
      %p372 = scmp.le.s32.totalorder 1, %s24
      %p373 = scmp.lt.s32.totalorder %s24, 5
      %p374 = pnand %p372, %p373
      %p375 = pneg %p374
      // Predicated region
      $region57: #{tpu_custom_call.1} parent=5 // pred_check
        _
      $region58: #{tpu_custom_call.1} parent=5 // pred_check_branch
        %377 = sbr.rel (%p374) target = $region60
      $region59: #{tpu_custom_call.1} parent=5 // pred_region
        %s378 = ssub.s32 %s24, 1
        %s379 = sand.u32 %s37, 1
        %s380 = scalar_lea.sflag [#allocation3], %s379
        %s381 = sand.u32 %s37, 1
        %s382 = smul.addr %s381, 16
        %s383 = scalar_lea.vmem [#allocation2], %s382
        // Predicated region
        $region61: #{tpu_custom_call.1} parent=59 // pred_check
          %p384 = pneg %p50
        $region62: #{tpu_custom_call.1} parent=59 // pred_check_branch
          %386 = sbr.rel (%p384) target = $region64
        $region63: #{tpu_custom_call.1} parent=59 // pred_region
          %387 = dma.done %s380, 256
        $region64: #{tpu_custom_call.1} parent=59 // pred_fallthru
          _
        // Predicated region
        $region65: #{tpu_custom_call.1} parent=59 // pred_check
          %p388 = pneg %p176
        $region66: #{tpu_custom_call.1} parent=59 // pred_check_branch
          %390 = sbr.rel (%p388) target = $region68
        $region67: #{tpu_custom_call.1} parent=59 // pred_region
          %391 = dma.done [#allocation6], 1024
        $region68: #{tpu_custom_call.1} parent=59 // pred_fallthru
          _
        // Predicated region
        $region69: #{tpu_custom_call.1} parent=59 // pred_check
          %p392 = pneg %p197
        $region70: #{tpu_custom_call.1} parent=59 // pred_check_branch
          %394 = sbr.rel (%p392) target = $region72
        $region71: #{tpu_custom_call.1} parent=59 // pred_region
          %395 = dma.done [#allocation6], 2048
        $region72: #{tpu_custom_call.1} parent=59 // pred_fallthru
          _
        // Predicated region
        $region73: #{tpu_custom_call.1} parent=59 // pred_check
          %p396 = pneg %p218
        $region74: #{tpu_custom_call.1} parent=59 // pred_check_branch
          %398 = sbr.rel (%p396) target = $region76
        $region75: #{tpu_custom_call.1} parent=59 // pred_region
          %399 = dma.done [#allocation9], 1024
        $region76: #{tpu_custom_call.1} parent=59 // pred_fallthru
          _
        // Predicated region
        $region77: #{tpu_custom_call.1} parent=59 // pred_check
          %p400 = pneg %p239
        $region78: #{tpu_custom_call.1} parent=59 // pred_check_branch
          %402 = sbr.rel (%p400) target = $region80
        $region79: #{tpu_custom_call.1} parent=59 // pred_region
          %403 = dma.done [#allocation9], 1024
        $region80: #{tpu_custom_call.1} parent=59 // pred_fallthru
          _
        %s404 = sand.u32 %s37, 1
        %s405 = scalar_lea.sflag [#allocation3], %s404
        %s406 = sand.u32 %s37, 1
        %s407 = smul.addr %s406, 16
        %s408 = scalar_lea.vmem [#allocation2], %s407
        %p409 = pneg %p50
        %p410 = pneg %p47
        %p411 = pneg %p71
        %p412 = pneg %p68
        %p413 = pneg %p92
        %p414 = pneg %p89
        %p415 = pneg %p113
        %p416 = pneg %p110
        %p417 = pneg %p134
        %p418 = pneg %p131
        %p419 = pneg %p155
        %p420 = pneg %p152
        %p421 = pneg %p176
        %p422 = pneg %p173
        %p423 = pneg %p197
        %p424 = pneg %p194
        %p425 = pneg %p218
        %p426 = pneg %p215
        %p427 = pneg %p239
        %p428 = pneg %p236
        %p429 = pneg %p265
        %p430 = pneg %p262
        %s431 = sand.u32 %s252, 1
        %s432 = scalar_lea.sflag [#allocation4], %s431
        %s433 = sand.u32 %s252, 1
        %s434 = smul.addr %s433, 16
        %s435 = scalar_lea.vmem [#allocation11], %s434
        %v437 = vld [vmem:[%s3] sm:$0xff]
        %v438 = vld [vmem:[%s3 + $0x8] sm:$0xff]
        %v439 = vld [vmem:[%s1] sm:$0xf]
        %v440 = vld [vmem:[%s1 + $0x4] sm:$0xf]
        %v441 = vld [vmem:[%s2] sm:$0xf]
        %v442 = vld [vmem:[%s2 + $0x4] sm:$0xf]
        %v443 = vld [vmem:[#allocation7] sm:$0xff]
        %v444 = vld [vmem:[#allocation7 + $0x8] sm:$0xff]
        %v445 = vld [vmem:[#allocation7 + $0x10] sm:$0xff]
        %v446 = vld [vmem:[#allocation7 + $0x18] sm:$0xff]
        %v447 = vld [vmem:[#allocation7 + $0x20] sm:$0xff]
        %v448 = vld [vmem:[#allocation7 + $0x28] sm:$0xff]
        %v449 = vld [vmem:[#allocation7 + $0x30] sm:$0xff]
        %v450 = vld [vmem:[#allocation7 + $0x38] sm:$0xff]
        %v451 = vld [vmem:[#allocation7 + $0x40] sm:$0xff]
        %v452 = vld [vmem:[#allocation7 + $0x48] sm:$0xff]
        %v453 = vld [vmem:[#allocation7 + $0x50] sm:$0xff]
        %v454 = vld [vmem:[#allocation7 + $0x58] sm:$0xff]
        %v455 = vld [vmem:[#allocation7 + $0x60] sm:$0xff]
        %v456 = vld [vmem:[#allocation7 + $0x68] sm:$0xff]
        %v457 = vld [vmem:[#allocation7 + $0x70] sm:$0xff]
        %v458 = vld [vmem:[#allocation7 + $0x78] sm:$0xff]
        %v459 = vld [vmem:[#allocation8] sm:$0xf]
        %v460 = vld [vmem:[#allocation8 + $0x4] sm:$0xf]
        %v461 = vld [vmem:[#allocation8 + $0x8] sm:$0xf]
        %v462 = vld [vmem:[#allocation8 + $0xc] sm:$0xf]
        %v463 = vld [vmem:[#allocation8 + $0x10] sm:$0xf]
        %v464 = vld [vmem:[#allocation8 + $0x14] sm:$0xf]
        %v465 = vld [vmem:[#allocation8 + $0x18] sm:$0xf]
        %v466 = vld [vmem:[#allocation8 + $0x1c] sm:$0xf]
        %v467 = vld [vmem:[#allocation8 + $0x20] sm:$0xf]
        %v468 = vld [vmem:[#allocation8 + $0x24] sm:$0xf]
        %v469 = vld [vmem:[#allocation8 + $0x28] sm:$0xf]
        %v470 = vld [vmem:[#allocation8 + $0x2c] sm:$0xf]
        %v471 = vld [vmem:[#allocation8 + $0x30] sm:$0xf]
        %v472 = vld [vmem:[#allocation8 + $0x34] sm:$0xf]
        %v473 = vld [vmem:[#allocation8 + $0x38] sm:$0xf]
        %v474 = vld [vmem:[#allocation8 + $0x3c] sm:$0xf]
        %v475 = vld [vmem:[#allocation10] sm:$0xf]
        %v476 = vld [vmem:[#allocation10 + $0x4] sm:$0xf]
        %v477 = vld [vmem:[#allocation10 + $0x8] sm:$0xf]
        %v478 = vld [vmem:[#allocation10 + $0xc] sm:$0xf]
        %v479 = vld [vmem:[#allocation10 + $0x10] sm:$0xf]
        %v480 = vld [vmem:[#allocation10 + $0x14] sm:$0xf]
        %v481 = vld [vmem:[#allocation10 + $0x18] sm:$0xf]
        %v482 = vld [vmem:[#allocation10 + $0x1c] sm:$0xf]
        %v483 = vld [vmem:[#allocation10 + $0x20] sm:$0xf]
        %v484 = vld [vmem:[#allocation10 + $0x24] sm:$0xf]
        %v485 = vld [vmem:[#allocation10 + $0x28] sm:$0xf]
        %v486 = vld [vmem:[#allocation10 + $0x2c] sm:$0xf]
        %v487 = vld [vmem:[#allocation10 + $0x30] sm:$0xf]
        %v488 = vld [vmem:[#allocation10 + $0x34] sm:$0xf]
        %v489 = vld [vmem:[#allocation10 + $0x38] sm:$0xf]
        %v490 = vld [vmem:[#allocation10 + $0x3c] sm:$0xf]
        %v491 = vld [vmem:[%s4] sm:$0xf]
        %v492 = vld [vmem:[%s5] sm:$0xf]
        %v493 = vld [vmem:[%s383] sm:$0xff]
        %v494 = vld [vmem:[%s383 + $0x8] sm:$0xff]
        %v495 = vpack.c.bf16 %v494, %v493
        %497 = vset.pattern.permute.xlu0 0
        %498 = vperm.xlu0 %497, %v437
        %v499 = vpop.permute.xlu0 %498
        %502 = vset.pattern.permute.xlu0 0
        %503 = vperm.xlu0 %502, %v438
        %v504 = vpop.permute.xlu0 %503
        %v508 = vunpack.c.l.b16 %v439
        %v509 = vunpack.c.l.b16 %v440
        %v510 = vpack.c.b16 %v509, %v508
        %vm511 = vcmask 130048
        %v513 = vsel %vm511, %v510, 0
        %515 = vmatprep.subr.bf16.mxu0 0
        %516 = vmatpush1.bf16.msra.mxu0 %v495
        %517 = vmatprep.subr.bf16.mxu0 0
        %518 = vmatpush1.bf16.msra.mxu0 0
        %519 = vmatprep.subr.bf16.mxu0 0
        %520 = vmatpush1.bf16.msra.mxu0 0
        %521 = vmatprep.subr.bf16.mxu0 0
        %522 = vmatpush1.bf16.msra.mxu0 0
        %523 = vmatprep.subr.bf16.mxu0 0
        %524 = vmatpush1.bf16.msra.mxu0 0
        %525 = vmatprep.subr.bf16.mxu0 0
        %526 = vmatpush1.bf16.msra.mxu0 0
        %527 = vmatprep.subr.bf16.mxu0 0
        %528 = vmatpush1.bf16.msra.mxu0 0
        %529 = vmatprep.subr.bf16.mxu0 0
        %530 = vmatpush1.bf16.msra.mxu0 0
        %531 = vmatprep.subr.bf16.mxu0 0
        %532 = vmatpush1.bf16.msra.mxu0 0
        %533 = vmatprep.subr.bf16.mxu0 0
        %534 = vmatpush1.bf16.msra.mxu0 0
        %535 = vmatprep.subr.bf16.mxu0 0
        %536 = vmatpush1.bf16.msra.mxu0 0
        %537 = vmatprep.subr.bf16.mxu0 0
        %538 = vmatpush1.bf16.msra.mxu0 0
        %539 = vmatprep.subr.bf16.mxu0 0
        %540 = vmatpush1.bf16.msra.mxu0 0
        %541 = vmatprep.subr.bf16.mxu0 0
        %542 = vmatpush1.bf16.msra.mxu0 0
        %543 = vmatprep.subr.bf16.mxu0 0
        %544 = vmatpush1.bf16.msra.mxu0 0
        %545 = vmatprep.subr.bf16.mxu0 0
        %546 = vmatpush1.bf16.msra.mxu0 0
        %547 = vmatprep.mubr.bf16.mxu0 0
        %548 = vmatmul.mubr.bf16.gmra.mrb[0].mxu0 %v513
        %v549 = vpop.f32.mrb[0].mxu0
        %v550 = vadd.f32 %v499, %v549
        %v551 = vpop.f32.mrb[0].mxu0
        %v552 = vpop.f32.mrb[0].mxu0
        %v553 = vadd.f32 %v504, %v552
        %v554 = vpop.f32.mrb[0].mxu0
        %555 = vdwg.mxu0
        %v556 = vmax.f32 %v550, 0.0
        %v557 = vmax.f32 %v553, 0.0
        %558 = vset.pattern.permute.xlu0 1
        %559 = vperm.xlu0 %558, %v437
        %v560 = vpop.permute.xlu0 %559
        %562 = vset.pattern.permute.xlu0 1
        %563 = vperm.xlu0 %562, %v438
        %v564 = vpop.permute.xlu0 %563
        %v566 = vmul.f32 %v556, %v560
        %v567 = vmul.f32 %v557, %v564
        %568 = vset.pattern.permute.xlu0 2
        %569 = vperm.xlu0 %568, %v437
        %v570 = vpop.permute.xlu0 %569
        %572 = vset.pattern.permute.xlu0 2
        %573 = vperm.xlu0 %572, %v438
        %v574 = vpop.permute.xlu0 %573
        %v576 = vadd.f32 %v566, %v570
        %v577 = vadd.f32 %v567, %v574
        %578 = vadd.xlane.f32.xlu0 %v576
        %v579 = vpop.xlane.xlu0 %578
        %580 = vadd.xlane.f32.xlu0 %v577
        %v581 = vpop.xlane.xlu0 %580
        %v582 = vmul.f32 %v437, 96.0
        %v583 = vmul.f32 %v438, 96.0
        %v584 = vsub.f32 %v579, %v582
        %v585 = vsub.f32 %v581, %v583
        %v586 = vmul.f32 %v584, 0.03125
        %v587 = vmul.f32 %v585, 0.03125
        %590 = vrot.lane.b32.xlu0 %v586, 122
        %v591 = vpop.permute.xlu0 %590
        %592 = vrot.lane.b32.xlu0 %v587, 122
        %v593 = vpop.permute.xlu0 %592
        %v597 = vsel %vm511, %v491, 0
        %599 = vmatprep.subr.mxu0 0.0
        %600 = vmatpush1.msra.mxu0 %v591
        %601 = vmatprep.subr.mxu0 0.0
        %602 = vmatpush1.msra.mxu0 %v593
        %603 = vmatprep.subr.mxu0 0.0
        %604 = vmatpush1.msra.mxu0 0.0
        %605 = vmatprep.subr.mxu0 0.0
        %606 = vmatpush1.msra.mxu0 0.0
        %607 = vmatprep.subr.mxu0 0.0
        %608 = vmatpush1.msra.mxu0 0.0
        %609 = vmatprep.subr.mxu0 0.0
        %610 = vmatpush1.msra.mxu0 0.0
        %611 = vmatprep.subr.mxu0 0.0
        %612 = vmatpush1.msra.mxu0 0.0
        %613 = vmatprep.subr.mxu0 0.0
        %614 = vmatpush1.msra.mxu0 0.0
        %615 = vmatprep.subr.mxu0 0.0
        %616 = vmatpush1.msra.mxu0 0.0
        %617 = vmatprep.subr.mxu0 0.0
        %618 = vmatpush1.msra.mxu0 0.0
        %619 = vmatprep.subr.mxu0 0.0
        %620 = vmatpush1.msra.mxu0 0.0
        %621 = vmatprep.subr.mxu0 0.0
        %622 = vmatpush1.msra.mxu0 0.0
        %623 = vmatprep.subr.mxu0 0.0
        %624 = vmatpush1.msra.mxu0 0.0
        %625 = vmatprep.subr.mxu0 0.0
        %626 = vmatpush1.msra.mxu0 0.0
        %627 = vmatprep.subr.mxu0 0.0
        %628 = vmatpush1.msra.mxu0 0.0
        %629 = vmatprep.subr.mxu0 0.0
        %630 = vmatpush1.msra.mxu0 0.0
        %631 = vmatprep.subr.mxu0 0.0
        %632 = vmatpush1.msra.mxu0 0.0
        %633 = vmatprep.subr.mxu0 0.0
        %634 = vmatpush1.msra.mxu0 0.0
        %635 = vmatprep.subr.mxu0 0.0
        %636 = vmatpush1.msra.mxu0 0.0
        %637 = vmatprep.subr.mxu0 0.0
        %638 = vmatpush1.msra.mxu0 0.0
        %639 = vmatprep.subr.mxu0 0.0
        %640 = vmatpush1.msra.mxu0 0.0
        %641 = vmatprep.subr.mxu0 0.0
        %642 = vmatpush1.msra.mxu0 0.0
        %643 = vmatprep.subr.mxu0 0.0
        %644 = vmatpush1.msra.mxu0 0.0
        %645 = vmatprep.subr.mxu0 0.0
        %646 = vmatpush1.msra.mxu0 0.0
        %647 = vmatprep.subr.mxu0 0.0
        %648 = vmatpush1.msra.mxu0 0.0
        %649 = vmatprep.subr.mxu0 0.0
        %650 = vmatpush1.msra.mxu0 0.0
        %651 = vmatprep.subr.mxu0 0.0
        %652 = vmatpush1.msra.mxu0 0.0
        %653 = vmatprep.subr.mxu0 0.0
        %654 = vmatpush1.msra.mxu0 0.0
        %655 = vmatprep.subr.mxu0 0.0
        %656 = vmatpush1.msra.mxu0 0.0
        %657 = vmatprep.subr.mxu0 0.0
        %658 = vmatpush1.msra.mxu0 0.0
        %659 = vmatprep.subr.mxu0 0.0
        %660 = vmatpush1.msra.mxu0 0.0
        %661 = vmatprep.subr.mxu0 0.0
        %662 = vmatpush1.msra.mxu0 0.0
        %663 = vmatprep.mubr.f32.mxu0 0.0
        %664 = vmatmul.mubr.f32.gmra.mrb[0].mxu0 %v597
        %v665 = vpop.f32.mrb[0].mxu0
        %v666 = vadd.f32 %v492, %v665
        %v667 = vpop.f32.mrb[0].mxu0
        %668 = vdwg.mxu0
        %vm669 = vcmask 3072
        %v670 = vsel %vm669, %v666, -inf
        %v671 = vrot.slane %v670, 4
        %v672 = vmax.f32 %v670, %v671
        %v673 = vrot.slane %v672, 2
        %v674 = vmax.f32 %v672, %v673
        %v675 = vrot.slane %v674, 1
        %v676 = vmax.f32 %v674, %v675
        %v677 = vsub.f32 %v666, %v676
        %v678 = vmul.f32 %v677, 1.442695
        %v679 = vpow.pop %v678
        %v680 = vsel %vm669, %v679, 0.0
        %v681 = vrot.slane %v680, 4
        %v682 = vadd.f32 %v680, %v681
        %v683 = vrot.slane %v682, 2
        %v684 = vadd.f32 %v682, %v683
        %v685 = vrot.slane %v684, 1
        %v686 = vadd.f32 %v684, %v685
        %v687 = vrcp.pop %v686
        %v688 = vmul.f32 %v679, %v687
        %v689 = vld [vmem:[#allocation5] sm:$0xff]
        %v690 = vld [vmem:[#allocation5 + $0x8] sm:$0xff]
        %v691 = vunpack.c.l.bf16 %v689
        %v692 = vunpack.c.h.bf16 %v689
        %v693 = vunpack.c.l.bf16 %v690
        %v694 = vunpack.c.h.bf16 %v690
        %s696 = vtos %v688
        %v697 = vstv %s696
        %v699 = vmul.f32 %v691, %v697
        %v700 = vmul.f32 %v692, %v697
        %v701 = vmul.f32 %v693, %v697
        %v702 = vmul.f32 %v694, %v697
        %s703 = scalar_lea.vmem [#allocation5], 16
        %v704 = vld [vmem:[%s703] sm:$0xff]
        %v705 = vld [vmem:[%s703 + $0x8] sm:$0xff]
        %v706 = vunpack.c.l.bf16 %v704
        %v707 = vunpack.c.h.bf16 %v704
        %v708 = vunpack.c.l.bf16 %v705
        %v709 = vunpack.c.h.bf16 %v705
        %v710 = vrot.slane %v688, 1
        %s711 = vtos %v710
        %v712 = vstv %s711
        %v714 = vmul.f32 %v706, %v712
        %v715 = vmul.f32 %v707, %v712
        %v716 = vmul.f32 %v708, %v712
        %v717 = vmul.f32 %v709, %v712
        %v718 = vadd.f32 %v699, %v714
        %v719 = vadd.f32 %v700, %v715
        %v720 = vadd.f32 %v701, %v716
        %v721 = vadd.f32 %v702, %v717
        %s722 = scalar_lea.vmem [#allocation5], 32
        %v723 = vld [vmem:[%s722] sm:$0xff]
        %v724 = vld [vmem:[%s722 + $0x8] sm:$0xff]
        %v725 = vunpack.c.l.bf16 %v723
        %v726 = vunpack.c.h.bf16 %v723
        %v727 = vunpack.c.l.bf16 %v724
        %v728 = vunpack.c.h.bf16 %v724
        %v729 = vrot.slane %v688, 2
        %s730 = vtos %v729
        %v731 = vstv %s730
        %v733 = vmul.f32 %v725, %v731
        %v734 = vmul.f32 %v726, %v731
        %v735 = vmul.f32 %v727, %v731
        %v736 = vmul.f32 %v728, %v731
        %v737 = vadd.f32 %v718, %v733
        %v738 = vadd.f32 %v719, %v734
        %v739 = vadd.f32 %v720, %v735
        %v740 = vadd.f32 %v721, %v736
        %s741 = scalar_lea.vmem [#allocation5], 48
        %v742 = vld [vmem:[%s741] sm:$0xff]
        %v743 = vld [vmem:[%s741 + $0x8] sm:$0xff]
        %v744 = vunpack.c.l.bf16 %v742
        %v745 = vunpack.c.h.bf16 %v742
        %v746 = vunpack.c.l.bf16 %v743
        %v747 = vunpack.c.h.bf16 %v743
        %v748 = vrot.slane %v688, 3
        %s749 = vtos %v748
        %v750 = vstv %s749
        %v752 = vmul.f32 %v744, %v750
        %v753 = vmul.f32 %v745, %v750
        %v754 = vmul.f32 %v746, %v750
        %v755 = vmul.f32 %v747, %v750
        %v756 = vadd.f32 %v737, %v752
        %v757 = vadd.f32 %v738, %v753
        %v758 = vadd.f32 %v739, %v754
        %v759 = vadd.f32 %v740, %v755
        %v760 = vpack.c.bf16 %v577, %v576
        %v777 = vunpack.c.l.b16 %v443
        %v778 = vunpack.c.h.b16 %v443
        %v779 = vunpack.c.l.b16 %v444
        %v780 = vunpack.c.h.b16 %v444
        %v781 = vunpack.c.l.b16 %v445
        %v782 = vunpack.c.h.b16 %v445
        %v783 = vunpack.c.l.b16 %v446
        %v784 = vunpack.c.h.b16 %v446
        %v785 = vunpack.c.l.b16 %v447
        %v786 = vunpack.c.h.b16 %v447
        %v787 = vunpack.c.l.b16 %v448
        %v788 = vunpack.c.h.b16 %v448
        %v789 = vunpack.c.l.b16 %v449
        %v790 = vunpack.c.h.b16 %v449
        %v791 = vunpack.c.l.b16 %v450
        %v792 = vunpack.c.h.b16 %v450
        %v793 = vunpack.c.l.b16 %v451
        %v794 = vunpack.c.h.b16 %v451
        %v795 = vunpack.c.l.b16 %v452
        %v796 = vunpack.c.h.b16 %v452
        %v797 = vunpack.c.l.b16 %v453
        %v798 = vunpack.c.h.b16 %v453
        %v799 = vunpack.c.l.b16 %v454
        %v800 = vunpack.c.h.b16 %v454
        %v801 = vunpack.c.l.b16 %v455
        %v802 = vunpack.c.h.b16 %v455
        %v803 = vunpack.c.l.b16 %v456
        %v804 = vunpack.c.h.b16 %v456
        %v805 = vunpack.c.l.b16 %v457
        %v806 = vunpack.c.h.b16 %v457
        %v807 = vunpack.c.l.b16 %v458
        %v808 = vunpack.c.h.b16 %v458
        %v809 = vpack.c.b16 %v779, %v777
        %v810 = vpack.c.b16 %v780, %v778
        %v811 = vpack.c.b16 %v783, %v781
        %v812 = vpack.c.b16 %v784, %v782
        %v813 = vpack.c.b16 %v787, %v785
        %v814 = vpack.c.b16 %v788, %v786
        %v815 = vpack.c.b16 %v791, %v789
        %v816 = vpack.c.b16 %v792, %v790
        %v817 = vpack.c.b16 %v795, %v793
        %v818 = vpack.c.b16 %v796, %v794
        %v819 = vpack.c.b16 %v799, %v797
        %v820 = vpack.c.b16 %v800, %v798
        %v821 = vpack.c.b16 %v803, %v801
        %v822 = vpack.c.b16 %v804, %v802
        %v823 = vpack.c.b16 %v807, %v805
        %v824 = vpack.c.b16 %v808, %v806
        %841 = vmatprep.subr.bf16.mxu0 %v810
        %842 = vmatpush1.bf16.msra.mxu0 %v809
        %843 = vmatprep.subr.bf16.mxu0 %v812
        %844 = vmatpush1.bf16.msra.mxu0 %v811
        %845 = vmatprep.subr.bf16.mxu0 %v814
        %846 = vmatpush1.bf16.msra.mxu0 %v813
        %847 = vmatprep.subr.bf16.mxu0 %v816
        %848 = vmatpush1.bf16.msra.mxu0 %v815
        %849 = vmatprep.subr.bf16.mxu0 %v818
        %850 = vmatpush1.bf16.msra.mxu0 %v817
        %851 = vmatprep.subr.bf16.mxu0 %v820
        %852 = vmatpush1.bf16.msra.mxu0 %v819
        %853 = vmatprep.subr.bf16.mxu0 %v822
        %854 = vmatpush1.bf16.msra.mxu0 %v821
        %855 = vmatprep.subr.bf16.mxu0 %v824
        %856 = vmatpush1.bf16.msra.mxu0 %v823
        %857 = vmatprep.subr.bf16.mxu0 0
        %858 = vmatpush1.bf16.msra.mxu0 0
        %859 = vmatprep.subr.bf16.mxu0 0
        %860 = vmatpush1.bf16.msra.mxu0 0
        %861 = vmatprep.subr.bf16.mxu0 0
        %862 = vmatpush1.bf16.msra.mxu0 0
        %863 = vmatprep.subr.bf16.mxu0 0
        %864 = vmatpush1.bf16.msra.mxu0 0
        %865 = vmatprep.subr.bf16.mxu0 0
        %866 = vmatpush1.bf16.msra.mxu0 0
        %867 = vmatprep.subr.bf16.mxu0 0
        %868 = vmatpush1.bf16.msra.mxu0 0
        %869 = vmatprep.subr.bf16.mxu0 0
        %870 = vmatpush1.bf16.msra.mxu0 0
        %871 = vmatprep.subr.bf16.mxu0 0
        %872 = vmatpush1.bf16.msra.mxu0 0
        %873 = vmatprep.mubr.bf16.mxu0 0
        %874 = vmatmul.mubr.bf16.gmra.mrb[0].mxu0 %v760
        %v875 = vpop.f32.mrb[0].mxu0
        %v876 = vadd.f32 0.0, %v875
        %v877 = vpop.f32.mrb[0].mxu0
        %v878 = vadd.f32 0.0, %v877
        %v879 = vpop.f32.mrb[0].mxu0
        %v880 = vadd.f32 0.0, %v879
        %v881 = vpop.f32.mrb[0].mxu0
        %v882 = vadd.f32 0.0, %v881
        %883 = vdwg.mxu0
        %v884 = vmul.f32 %v876, %v756
        %v885 = vmul.f32 %v880, %v758
        %v886 = vmul.f32 %v878, %v757
        %v887 = vmul.f32 %v882, %v759
        %v888 = vsub.f32 %v884, %v886
        %v889 = vsub.f32 %v885, %v887
        %v890 = vmul.f32 %v876, %v757
        %v891 = vmul.f32 %v880, %v759
        %v892 = vmul.f32 %v878, %v756
        %v893 = vmul.f32 %v882, %v758
        %v894 = vadd.f32 %v890, %v892
        %v895 = vadd.f32 %v891, %v893
        %v896 = vpack.c.bf16 %v889, %v888
        %v897 = vpack.c.bf16 %v895, %v894
        %v914 = vunpack.c.l.b16 %v475
        %v915 = vunpack.c.l.b16 %v476
        %v916 = vunpack.c.l.b16 %v477
        %v917 = vunpack.c.l.b16 %v478
        %v918 = vunpack.c.l.b16 %v479
        %v919 = vunpack.c.l.b16 %v480
        %v920 = vunpack.c.l.b16 %v481
        %v921 = vunpack.c.l.b16 %v482
        %v922 = vunpack.c.l.b16 %v483
        %v923 = vunpack.c.l.b16 %v484
        %v924 = vunpack.c.l.b16 %v485
        %v925 = vunpack.c.l.b16 %v486
        %v926 = vunpack.c.l.b16 %v487
        %v927 = vunpack.c.l.b16 %v488
        %v928 = vunpack.c.l.b16 %v489
        %v929 = vunpack.c.l.b16 %v490
        %v930 = vpack.c.b16 %v915, %v914
        %v931 = vpack.c.b16 %v917, %v916
        %v932 = vpack.c.b16 %v919, %v918
        %v933 = vpack.c.b16 %v921, %v920
        %v934 = vpack.c.b16 %v923, %v922
        %v935 = vpack.c.b16 %v925, %v924
        %v936 = vpack.c.b16 %v927, %v926
        %v937 = vpack.c.b16 %v929, %v928
        %946 = vmatprep.subr.bf16.mxu0 0
        %947 = vmatpush1.bf16.msra.mxu0 %v930
        %948 = vmatprep.subr.bf16.mxu0 0
        %949 = vmatpush1.bf16.msra.mxu0 %v931
        %950 = vmatprep.subr.bf16.mxu0 0
        %951 = vmatpush1.bf16.msra.mxu0 %v932
        %952 = vmatprep.subr.bf16.mxu0 0
        %953 = vmatpush1.bf16.msra.mxu0 %v933
        %954 = vmatprep.subr.bf16.mxu0 0
        %955 = vmatpush1.bf16.msra.mxu0 %v934
        %956 = vmatprep.subr.bf16.mxu0 0
        %957 = vmatpush1.bf16.msra.mxu0 %v935
        %958 = vmatprep.subr.bf16.mxu0 0
        %959 = vmatpush1.bf16.msra.mxu0 %v936
        %960 = vmatprep.subr.bf16.mxu0 0
        %961 = vmatpush1.bf16.msra.mxu0 %v937
        %962 = vmatprep.subr.bf16.mxu0 0
        %963 = vmatpush1.bf16.msra.mxu0 0
        %964 = vmatprep.subr.bf16.mxu0 0
        %965 = vmatpush1.bf16.msra.mxu0 0
        %966 = vmatprep.subr.bf16.mxu0 0
        %967 = vmatpush1.bf16.msra.mxu0 0
        %968 = vmatprep.subr.bf16.mxu0 0
        %969 = vmatpush1.bf16.msra.mxu0 0
        %970 = vmatprep.subr.bf16.mxu0 0
        %971 = vmatpush1.bf16.msra.mxu0 0
        %972 = vmatprep.subr.bf16.mxu0 0
        %973 = vmatpush1.bf16.msra.mxu0 0
        %974 = vmatprep.subr.bf16.mxu0 0
        %975 = vmatpush1.bf16.msra.mxu0 0
        %976 = vmatprep.subr.bf16.mxu0 0
        %977 = vmatpush1.bf16.msra.mxu0 0
        %978 = vmatprep.mubr.bf16.mxu0 0
        %979 = vmatmul.mubr.bf16.gmra.mrb[0].mxu0 %v897
        %v980 = vpop.f32.mrb[0].mxu0
        %v981 = vadd.f32 0.0, %v980
        %v982 = vpop.f32.mrb[0].mxu0
        %v983 = vpop.f32.mrb[0].mxu0
        %v984 = vadd.f32 0.0, %v983
        %v985 = vpop.f32.mrb[0].mxu0
        %986 = vdwg.mxu0
        %v1003 = vunpack.c.l.b16 %v459
        %v1004 = vunpack.c.l.b16 %v460
        %v1005 = vunpack.c.l.b16 %v461
        %v1006 = vunpack.c.l.b16 %v462
        %v1007 = vunpack.c.l.b16 %v463
        %v1008 = vunpack.c.l.b16 %v464
        %v1009 = vunpack.c.l.b16 %v465
        %v1010 = vunpack.c.l.b16 %v466
        %v1011 = vunpack.c.l.b16 %v467
        %v1012 = vunpack.c.l.b16 %v468
        %v1013 = vunpack.c.l.b16 %v469
        %v1014 = vunpack.c.l.b16 %v470
        %v1015 = vunpack.c.l.b16 %v471
        %v1016 = vunpack.c.l.b16 %v472
        %v1017 = vunpack.c.l.b16 %v473
        %v1018 = vunpack.c.l.b16 %v474
        %v1019 = vpack.c.b16 %v1004, %v1003
        %v1020 = vpack.c.b16 %v1006, %v1005
        %v1021 = vpack.c.b16 %v1008, %v1007
        %v1022 = vpack.c.b16 %v1010, %v1009
        %v1023 = vpack.c.b16 %v1012, %v1011
        %v1024 = vpack.c.b16 %v1014, %v1013
        %v1025 = vpack.c.b16 %v1016, %v1015
        %v1026 = vpack.c.b16 %v1018, %v1017
        %1035 = vmatprep.subr.bf16.mxu0 0
        %1036 = vmatpush1.bf16.msra.mxu0 %v1019
        %1037 = vmatprep.subr.bf16.mxu0 0
        %1038 = vmatpush1.bf16.msra.mxu0 %v1020
        %1039 = vmatprep.subr.bf16.mxu0 0
        %1040 = vmatpush1.bf16.msra.mxu0 %v1021
        %1041 = vmatprep.subr.bf16.mxu0 0
        %1042 = vmatpush1.bf16.msra.mxu0 %v1022
        %1043 = vmatprep.subr.bf16.mxu0 0
        %1044 = vmatpush1.bf16.msra.mxu0 %v1023
        %1045 = vmatprep.subr.bf16.mxu0 0
        %1046 = vmatpush1.bf16.msra.mxu0 %v1024
        %1047 = vmatprep.subr.bf16.mxu0 0
        %1048 = vmatpush1.bf16.msra.mxu0 %v1025
        %1049 = vmatprep.subr.bf16.mxu0 0
        %1050 = vmatpush1.bf16.msra.mxu0 %v1026
        %1051 = vmatprep.subr.bf16.mxu0 0
        %1052 = vmatpush1.bf16.msra.mxu0 0
        %1053 = vmatprep.subr.bf16.mxu0 0
        %1054 = vmatpush1.bf16.msra.mxu0 0
        %1055 = vmatprep.subr.bf16.mxu0 0
        %1056 = vmatpush1.bf16.msra.mxu0 0
        %1057 = vmatprep.subr.bf16.mxu0 0
        %1058 = vmatpush1.bf16.msra.mxu0 0
        %1059 = vmatprep.subr.bf16.mxu0 0
        %1060 = vmatpush1.bf16.msra.mxu0 0
        %1061 = vmatprep.subr.bf16.mxu0 0
        %1062 = vmatpush1.bf16.msra.mxu0 0
        %1063 = vmatprep.subr.bf16.mxu0 0
        %1064 = vmatpush1.bf16.msra.mxu0 0
        %1065 = vmatprep.subr.bf16.mxu0 0
        %1066 = vmatpush1.bf16.msra.mxu0 0
        %1067 = vmatprep.mubr.bf16.mxu0 0
        %1068 = vmatmul.mubr.bf16.gmra.mrb[0].mxu0 %v896
        %v1069 = vpop.f32.mrb[0].mxu0
        %v1070 = vadd.f32 %v981, %v1069
        %v1071 = vpop.f32.mrb[0].mxu0
        %v1072 = vpop.f32.mrb[0].mxu0
        %v1073 = vadd.f32 %v984, %v1072
        %v1074 = vpop.f32.mrb[0].mxu0
        %1075 = vdwg.mxu0
        %v1076 = vmax.f32 %v1070, 0.0
        %v1077 = vmax.f32 %v1073, 0.0
        %v1078 = vpack.c.bf16 %v1077, %v1076
        %1079 = vset.pattern.permute.xlu0 3
        %1080 = vperm.xlu0 %1079, %v437
        %v1081 = vpop.permute.xlu0 %1080
        %1083 = vset.pattern.permute.xlu0 3
        %1084 = vperm.xlu0 %1083, %v438
        %v1085 = vpop.permute.xlu0 %1084
        %v1089 = vunpack.c.l.b16 %v441
        %v1090 = vunpack.c.l.b16 %v442
        %v1091 = vpack.c.b16 %v1090, %v1089
        %v1093 = vsel %vm511, %v1091, 0
        %1095 = vmatprep.subr.bf16.mxu0 0
        %1096 = vmatpush1.bf16.msra.mxu0 %v1078
        %1097 = vmatprep.subr.bf16.mxu0 0
        %1098 = vmatpush1.bf16.msra.mxu0 0
        %1099 = vmatprep.subr.bf16.mxu0 0
        %1100 = vmatpush1.bf16.msra.mxu0 0
        %1101 = vmatprep.subr.bf16.mxu0 0
        %1102 = vmatpush1.bf16.msra.mxu0 0
        %1103 = vmatprep.subr.bf16.mxu0 0
        %1104 = vmatpush1.bf16.msra.mxu0 0
        %1105 = vmatprep.subr.bf16.mxu0 0
        %1106 = vmatpush1.bf16.msra.mxu0 0
        %1107 = vmatprep.subr.bf16.mxu0 0
        %1108 = vmatpush1.bf16.msra.mxu0 0
        %1109 = vmatprep.subr.bf16.mxu0 0
        %1110 = vmatpush1.bf16.msra.mxu0 0
        %1111 = vmatprep.subr.bf16.mxu0 0
        %1112 = vmatpush1.bf16.msra.mxu0 0
        %1113 = vmatprep.subr.bf16.mxu0 0
        %1114 = vmatpush1.bf16.msra.mxu0 0
        %1115 = vmatprep.subr.bf16.mxu0 0
        %1116 = vmatpush1.bf16.msra.mxu0 0
        %1117 = vmatprep.subr.bf16.mxu0 0
        %1118 = vmatpush1.bf16.msra.mxu0 0
        %1119 = vmatprep.subr.bf16.mxu0 0
        %1120 = vmatpush1.bf16.msra.mxu0 0
        %1121 = vmatprep.subr.bf16.mxu0 0
        %1122 = vmatpush1.bf16.msra.mxu0 0
        %1123 = vmatprep.subr.bf16.mxu0 0
        %1124 = vmatpush1.bf16.msra.mxu0 0
        %1125 = vmatprep.subr.bf16.mxu0 0
        %1126 = vmatpush1.bf16.msra.mxu0 0
        %1127 = vmatprep.mubr.bf16.mxu0 0
        %1128 = vmatmul.mubr.bf16.gmra.mrb[0].mxu0 %v1093
        %v1129 = vpop.f32.mrb[0].mxu0
        %v1130 = vadd.f32 %v1081, %v1129
        %v1131 = vpop.f32.mrb[0].mxu0
        %v1132 = vpop.f32.mrb[0].mxu0
        %v1133 = vadd.f32 %v1085, %v1132
        %v1134 = vpop.f32.mrb[0].mxu0
        %1135 = vdwg.mxu0
        %v1136 = vmax.f32 %v1130, 0.0
        %v1137 = vmax.f32 %v1133, 0.0
        %1138 = vset.pattern.permute.xlu0 4
        %1139 = vperm.xlu0 %1138, %v437
        %v1140 = vpop.permute.xlu0 %1139
        %1142 = vset.pattern.permute.xlu0 4
        %1143 = vperm.xlu0 %1142, %v438
        %v1144 = vpop.permute.xlu0 %1143
        %v1146 = vmul.f32 %v1136, %v1140
        %v1147 = vmul.f32 %v1137, %v1144
        %1148 = vset.pattern.permute.xlu0 5
        %1149 = vperm.xlu0 %1148, %v437
        %v1150 = vpop.permute.xlu0 %1149
        %1152 = vset.pattern.permute.xlu0 5
        %1153 = vperm.xlu0 %1152, %v438
        %v1154 = vpop.permute.xlu0 %1153
        %v1156 = vadd.f32 %v1146, %v1150
        %v1157 = vadd.f32 %v1147, %v1154
        %v1158 = vadd.f32 %v493, %v1156
        %v1159 = vadd.f32 %v494, %v1157
        %vm1160 = vcmask 261120
        %1161 = vst.msk [vmem:[%s435] sm:$0xff] %vm1160, %v1158
        %1162 = vst.msk [vmem:[%s435 + $0x8] sm:$0xff] %vm1160, %v1159
        %s1163 = sand.u32 %s252, 1
        %s1164 = scalar_lea.sflag [#allocation4], %s1163
        %s1165 = sand.u32 %s252, 1
        %s1166 = smul.addr %s1165, 16
        %s1167 = scalar_lea.vmem [#allocation11], %s1166
        // Predicated region
        $region81: #{tpu_custom_call.1} parent=59 // pred_check
          %p1168 = pneg %p262
        $region82: #{tpu_custom_call.1} parent=59 // pred_check_branch
          %1170 = sbr.rel (%p1168) target = $region84
        $region83: #{tpu_custom_call.1} parent=59 // pred_region
          %s1172 = ssub.s32 256, 256
          %1173 = vsyncadd %s1164, %s1172
          %s1174 = smul.addr %s29, 2
          %s1175 = smul.addr %s1174, 128
          %s1176 = scalar_lea.hbm %s10, %s1175
          %s1177 = sshll.u32 %s1167, 4
          %s1178 = int_to_ptr.vmem [resolvable:$true] %s1177
          %1183 = dma.vmem_to_hbm [thread:$0]  %s1178, 256, %s1176, %s1164, 128, 128, 8
        $region84: #{tpu_custom_call.1} parent=59 // pred_fallthru
          _
      $region60: #{tpu_custom_call.1} parent=5 // pred_fallthru
        _
      %p1184 = scmp.le.s32.totalorder 2, %s24
      // Predicated region
      $region85: #{tpu_custom_call.1} parent=5 // pred_check
        %p1185 = pneg %p1184
      $region86: #{tpu_custom_call.1} parent=5 // pred_check_branch
        %1187 = sbr.rel (%p1185) target = $region88
      $region87: #{tpu_custom_call.1} parent=5 // pred_region
        %s1188 = ssub.s32 %s24, 2
        // Predicated region
        $region89: #{tpu_custom_call.1} parent=87 // pred_check
          %p1189 = pneg %p268
        $region90: #{tpu_custom_call.1} parent=87 // pred_check_branch
          %1191 = sbr.rel (%p1189) target = $region92
        $region91: #{tpu_custom_call.1} parent=87 // pred_region
          %s1192 = sand.u32 %s253, 1
          %s1193 = scalar_lea.sflag [#allocation4], %s1192
          %s1194 = sand.u32 %s253, 1
          %s1195 = smul.addr %s1194, 16
          %s1196 = scalar_lea.vmem [#allocation11], %s1195
          %1197 = dma.done %s1193, 256
        $region92: #{tpu_custom_call.1} parent=87 // pred_fallthru
          _
      $region88: #{tpu_custom_call.1} parent=5 // pred_fallthru
        _
    $region6: #{tpu_custom_call.1} parent=1 // loop_footer
      %s28 = sadd.s32 1, %s24
    $region7: #{tpu_custom_call.1} parent=1 // loop_footer_branch
      %23 = sbr.rel target = $region3
    $region8: #{tpu_custom_call.1} parent=1 // loop_exit
      _
    %1198 = vsyncpa [#allocation3], 1
    %s1199 = scalar_lea.sflag [#allocation3], 1
    %1200 = vsyncpa %s1199, 1
    %1201 = vsyncpa [#allocation6], 1
    %1202 = vsyncpa [#allocation9], 1
    %1203 = vsyncpa [#allocation4], 1
    %s1204 = scalar_lea.sflag [#allocation4], 1
    %1205 = vsyncpa %s1204, 1

</llo_original>
